<compile_context>
chip_gen: v7x
topology: tpu7x:2x2x1
jax: 0.10.0
libtpu: 0.0.40
codegen_flags: <defaults>
</compile_context>

<pallas_src>
import jax
import jax.numpy as jnp
from jax.experimental import pallas as pl
from jax.experimental.pallas import tpu as pltpu

LEAK = 0.2
IN_F, H1, H2, OUT_F = 784, 512, 256, 1
OUT_PAD = 128          # lane-dense output width (column 0 holds the real value)
TB_MAX = 1024          # max batch tile (tunable; 512-2048 reasonable)


def _leaky_relu(x, slope):
    return jnp.where(x > 0, x, slope * x)


def discriminator_kernel(x_ref, w1_ref, b1_ref, w2_ref, b2_ref, w3_ref, b3_ref,
                         o_ref):
    """One batch tile of the fused 3-layer MLP.

    x_ref  : (tb, 784)   f32   (cast to bf16 in-kernel)
    w1_ref : (784, 512)  bf16      b1_ref : (1, 512) f32
    w2_ref : (512, 256)  bf16      b2_ref : (1, 256) f32
    w3_ref : (256, 128)  bf16  (w3 column replicated across all 128 lanes)
    b3_ref : (1, 1)      f32
    o_ref  : (tb, 128)   bf16  (sigmoid output, identical across lanes)
    """
    # In-kernel bf16 cast (avoids a separate wrapper-side HBM pass over x).
    x = x_ref[...].astype(jnp.bfloat16)                          # (tb, 784)

    # Layer 1: Linear(784, 512) + LeakyReLU(0.2) -- bf16 MXU, f32 accumulate.
    h1 = jnp.dot(x, w1_ref[...], preferred_element_type=jnp.float32)
    h1 = _leaky_relu(h1 + b1_ref[...], LEAK)                     # (tb, 512) f32

    # Layer 2: Linear(512, 256) + LeakyReLU(0.2)
    h2 = jnp.dot(h1.astype(jnp.bfloat16), w2_ref[...],
                 preferred_element_type=jnp.float32)
    h2 = _leaky_relu(h2 + b2_ref[...], LEAK)                     # (tb, 256) f32

    # Layer 3: Linear(256, 1) via a lane-replicated MXU matmul -> produces the
    # lane-dense (tb, 128) output slab directly (every column is the same logit).
    h3 = jnp.dot(h2.astype(jnp.bfloat16), w3_ref[...],
                 preferred_element_type=jnp.float32)             # (tb, 128) f32
    h3 = h3 + b3_ref[...]

    # Exact sigmoid (exp on the EUP, exact reciprocal keeps the result in [0,1]).
    prob = 1.0 / (1.0 + jnp.exp(-h3))
    o_ref[...] = prob.astype(o_ref.dtype)


def prepare_params(params):
    """One-time parameter prep: hoists the bf16 casts and the w3 lane replication
    out of the per-forward-call path."""
    w1, b1, w2, b2, w3, b3 = params
    w1_bf = w1.astype(jnp.bfloat16)
    w2_bf = w2.astype(jnp.bfloat16)
    # Replicate the (256, 1) w3 column across 128 lanes so layer 3 runs on the
    # otherwise-idle MXU and writes the lane-dense output slab directly.
    w3_rep = jnp.broadcast_to(w3.reshape(H2, OUT_F),
                              (H2, OUT_PAD)).astype(jnp.bfloat16)
    return (w1_bf,
            b1.reshape(1, H1).astype(jnp.float32),
            w2_bf,
            b2.reshape(1, H2).astype(jnp.float32),
            w3_rep,
            b3.reshape(1, 1).astype(jnp.float32))


def _choose_tb(batch, tb_max=TB_MAX):
    """Largest tile that amortizes per-grid-step overhead, while guaranteeing
    >= 2 grid steps when the batch allows (so v7x's two TensorCores both work)."""
    b8 = ((batch + 7) // 8) * 8            # sublane granularity
    tb = min(tb_max, b8)
    if tb == b8 and b8 >= 16:              # would be a single grid step -> split
        tb = ((b8 // 2 + 7) // 8) * 8
    return tb


def discriminator_forward(x, prepared_params, *, tb=None):
    """x: (B, 784) float32. Returns (B, 1) float32 in [0, 1]."""
    w1_bf, b1, w2_bf, b2, w3_rep, b3 = prepared_params
    B = x.shape[0]
    if tb is None:
        tb = _choose_tb(B)

    # Ragged batch: pad up to a multiple of the batch tile.
    B_pad = pl.cdiv(B, tb) * tb
    if B_pad != B:
        x = jnp.pad(x, ((0, B_pad - B), (0, 0)))

    grid = (B_pad // tb,)
    full = lambda i: (0, 0)   # weights/biases: same (resident) block every step

    out = pl.pallas_call(
        discriminator_kernel,
        out_shape=jax.ShapeDtypeStruct((B_pad, OUT_PAD), jnp.bfloat16),
        grid_spec=pltpu.PrefetchScalarGridSpec(
            num_scalar_prefetch=0,
            grid=grid,
            in_specs=[
                pl.BlockSpec((tb, IN_F), lambda i: (i, 0)),   # x tile (f32)
                pl.BlockSpec((IN_F, H1), full),               # W1 (bf16, resident)
                pl.BlockSpec((1, H1), full),                  # b1 (f32)
                pl.BlockSpec((H1, H2), full),                 # W2 (bf16, resident)
                pl.BlockSpec((1, H2), full),                  # b2 (f32)
                pl.BlockSpec((H2, OUT_PAD), full),            # W3 replicated (bf16)
                pl.BlockSpec((1, 1), full),                   # b3 (f32)
            ],
            out_specs=pl.BlockSpec((tb, OUT_PAD), lambda i: (i, 0)),
        ),
        compiler_params=pltpu.CompilerParams(
            dimension_semantics=("parallel",),       # shard tiles across v7x's 2 TCs
            vmem_limit_bytes=32 * 1024 * 1024,       # headroom for tb~1024 on v5e
        ),
    )(x, w1_bf, b1, w2_bf, b2, w3_rep, b3)

    # Drop batch padding (garbage rows) and the lane-broadcast columns.
    return out[:B, :OUT_F].astype(jnp.float32)


def init_params(key):
    """Deterministic init matching PyTorch nn.Linear defaults:
    U(-1/sqrt(fan_in), 1/sqrt(fan_in)); weights stored (in_features, out_features)."""
    ks = jax.random.split(key, 6)

    def linear(kw, kb, fan_in, fan_out):
        bound = 1.0 / jnp.sqrt(fan_in)
        w = jax.random.uniform(kw, (fan_in, fan_out), jnp.float32, -bound, bound)
        b = jax.random.uniform(kb, (1, fan_out), jnp.float32, -bound, bound)
        return w, b

    w1, b1 = linear(ks[0], ks[1], IN_F, H1)
    w2, b2 = linear(ks[2], ks[3], H1, H2)
    w3, b3 = linear(ks[4], ks[5], H2, OUT_F)
    return (w1, b1, w2, b2, w3, b3)


def reference_forward(x, params):
    """Pure-JAX f32 reference (eval-mode dropout = identity)."""
    w1, b1, w2, b2, w3, b3 = params
    h = _leaky_relu(x @ w1 + b1, LEAK)
    h = _leaky_relu(h @ w2 + b2, LEAK)
    return jax.nn.sigmoid(h @ w3 + b3)


if __name__ == "__main__":
    key = jax.random.PRNGKey(0)
    k_param, k_x = jax.random.split(key)

    params = init_params(k_param)
    prepared = prepare_params(params)   # one-time bf16 / w3-replication prep

    # Small batch of flattened 28x28 "images": (B, 784).  B=16 exercises the
    # multi-tile path (tile picker splits it into 2 grid steps of 8 rows).
    B = 16
    x = jax.random.normal(k_x, (B, IN_F), dtype=jnp.float32)

    out = discriminator_forward(x, prepared)
    out = jax.block_until_ready(out)

    ref = reference_forward(x, params)
    assert out.shape == (B, OUT_F)
    # bf16 MXU inputs / bf16 output slab with f32 accumulation -> relaxed tolerance.
    assert jnp.allclose(out, ref, atol=2e-2, rtol=2e-2), "mismatch vs reference"
    assert jnp.all((out >= 0.0) & (out <= 1.0)), "sigmoid out of range"

    print("KERNEL_OK")
</pallas_src>

<mosaic_0001>
module attributes {stable_mosaic.version = 11 : i64} {
  func.func @discriminator_kernel(%arg0: i32, %arg1: memref<8x784xf32, #tpu.memory_space<vmem>>, %arg2: memref<784x512xbf16, #tpu.memory_space<vmem>>, %arg3: memref<1x512xf32, #tpu.memory_space<vmem>>, %arg4: memref<512x256xbf16, #tpu.memory_space<vmem>>, %arg5: memref<1x256xf32, #tpu.memory_space<vmem>>, %arg6: memref<256x128xbf16, #tpu.memory_space<vmem>>, %arg7: memref<1x1xf32, #tpu.memory_space<vmem>>, %arg8: memref<8x128xbf16, #tpu.memory_space<vmem>>) attributes {dimension_semantics = [#tpu.dimension_semantics<parallel>], iteration_bounds = array<i64: 2>, scalar_prefetch = 0 : i64, scratch_operands = 0 : i64, tpu.core_type = #tpu.core_type<tc>, window_params = [{transform_indices = @transform_0, window_bounds = array<i64: 8, 784>}, {pipeline_mode = #tpu.pipeline_mode<synchronous>, transform_indices = @transform_1, window_bounds = array<i64: 784, 512>}, {pipeline_mode = #tpu.pipeline_mode<synchronous>, transform_indices = @transform_2, window_bounds = array<i64: 1, 512>}, {pipeline_mode = #tpu.pipeline_mode<synchronous>, transform_indices = @transform_3, window_bounds = array<i64: 512, 256>}, {pipeline_mode = #tpu.pipeline_mode<synchronous>, transform_indices = @transform_4, window_bounds = array<i64: 1, 256>}, {pipeline_mode = #tpu.pipeline_mode<synchronous>, transform_indices = @transform_5, window_bounds = array<i64: 256, 128>}, {pipeline_mode = #tpu.pipeline_mode<synchronous>, transform_indices = @transform_6, window_bounds = array<i64: 1, 1>}, {transform_indices = @transform_7, window_bounds = array<i64: 8, 128>}]} {
    %c0 = arith.constant 0 : index
    %c0_0 = arith.constant 0 : index
    %0 = vector.load %arg1[%c0, %c0_0] : memref<8x784xf32, #tpu.memory_space<vmem>>, vector<8x784xf32>
    %1 = arith.truncf %0 : vector<8x784xf32> to vector<8x784xbf16>
    %c0_1 = arith.constant 0 : index
    %c0_2 = arith.constant 0 : index
    %2 = vector.load %arg2[%c0_1, %c0_2] : memref<784x512xbf16, #tpu.memory_space<vmem>>, vector<784x512xbf16>
    %cst = arith.constant dense<0.000000e+00> : vector<8x512xf32>
    %3 = tpu.matmul %1, %2, %cst {dimension_numbers = #tpu.dot_dimension_numbers<[1], [0], [0], [1], [0, 0, 1, 1], [], []>} : vector<8x784xbf16>, vector<784x512xbf16>, vector<8x512xf32> -> vector<8x512xf32>
    %c0_3 = arith.constant 0 : index
    %c0_4 = arith.constant 0 : index
    %4 = vector.load %arg3[%c0_3, %c0_4] : memref<1x512xf32, #tpu.memory_space<vmem>>, vector<1x512xf32>
    %5 = vector.broadcast %4 : vector<1x512xf32> to vector<8x512xf32>
    %6 = arith.addf %3, %5 : vector<8x512xf32>
    %cst_5 = arith.constant 0.000000e+00 : f32
    %7 = vector.broadcast %cst_5 : f32 to vector<8x512xf32>
    %8 = arith.cmpf ogt, %6, %7 : vector<8x512xf32>
    %cst_6 = arith.constant 2.000000e-01 : f32
    %9 = vector.broadcast %cst_6 : f32 to vector<8x512xf32>
    %10 = arith.mulf %9, %6 : vector<8x512xf32>
    %11 = arith.select %8, %6, %10 : vector<8x512xi1>, vector<8x512xf32>
    %12 = arith.truncf %11 : vector<8x512xf32> to vector<8x512xbf16>
    %c0_7 = arith.constant 0 : index
    %c0_8 = arith.constant 0 : index
    %13 = vector.load %arg4[%c0_7, %c0_8] : memref<512x256xbf16, #tpu.memory_space<vmem>>, vector<512x256xbf16>
    %cst_9 = arith.constant dense<0.000000e+00> : vector<8x256xf32>
    %14 = tpu.matmul %12, %13, %cst_9 {dimension_numbers = #tpu.dot_dimension_numbers<[1], [0], [0], [1], [0, 0, 1, 1], [], []>} : vector<8x512xbf16>, vector<512x256xbf16>, vector<8x256xf32> -> vector<8x256xf32>
    %c0_10 = arith.constant 0 : index
    %c0_11 = arith.constant 0 : index
    %15 = vector.load %arg5[%c0_10, %c0_11] : memref<1x256xf32, #tpu.memory_space<vmem>>, vector<1x256xf32>
    %16 = vector.broadcast %15 : vector<1x256xf32> to vector<8x256xf32>
    %17 = arith.addf %14, %16 : vector<8x256xf32>
    %cst_12 = arith.constant 0.000000e+00 : f32
    %18 = vector.broadcast %cst_12 : f32 to vector<8x256xf32>
    %19 = arith.cmpf ogt, %17, %18 : vector<8x256xf32>
    %cst_13 = arith.constant 2.000000e-01 : f32
    %20 = vector.broadcast %cst_13 : f32 to vector<8x256xf32>
    %21 = arith.mulf %20, %17 : vector<8x256xf32>
    %22 = arith.select %19, %17, %21 : vector<8x256xi1>, vector<8x256xf32>
    %23 = arith.truncf %22 : vector<8x256xf32> to vector<8x256xbf16>
    %c0_14 = arith.constant 0 : index
    %c0_15 = arith.constant 0 : index
    %24 = vector.load %arg6[%c0_14, %c0_15] : memref<256x128xbf16, #tpu.memory_space<vmem>>, vector<256x128xbf16>
    %cst_16 = arith.constant dense<0.000000e+00> : vector<8x128xf32>
    %25 = tpu.matmul %23, %24, %cst_16 {dimension_numbers = #tpu.dot_dimension_numbers<[1], [0], [0], [1], [0, 0, 1, 1], [], []>} : vector<8x256xbf16>, vector<256x128xbf16>, vector<8x128xf32> -> vector<8x128xf32>
    %c0_17 = arith.constant 0 : index
    %c0_18 = arith.constant 0 : index
    %26 = vector.load %arg7[%c0_17, %c0_18] : memref<1x1xf32, #tpu.memory_space<vmem>>, vector<1x1xf32>
    %27 = vector.broadcast %26 : vector<1x1xf32> to vector<8x128xf32>
    %28 = arith.addf %25, %27 : vector<8x128xf32>
    %cst_19 = arith.constant 0.000000e+00 : f32
    %29 = vector.broadcast %cst_19 : f32 to vector<8x128xf32>
    %30 = arith.subf %29, %28 : vector<8x128xf32>
    %31 = math.exp %30 : vector<8x128xf32>
    %cst_20 = arith.constant 1.000000e+00 : f32
    %32 = vector.broadcast %cst_20 : f32 to vector<8x128xf32>
    %33 = arith.addf %32, %31 : vector<8x128xf32>
    %cst_21 = arith.constant 1.000000e+00 : f32
    %34 = vector.broadcast %cst_21 : f32 to vector<8x128xf32>
    %35 = arith.divf %34, %33 : vector<8x128xf32>
    %36 = arith.truncf %35 : vector<8x128xf32> to vector<8x128xbf16>
    %c0_22 = arith.constant 0 : index
    %c0_23 = arith.constant 0 : index
    %37 = vector.load %arg8[%c0_22, %c0_23] : memref<8x128xbf16, #tpu.memory_space<vmem>>, vector<8x128xbf16>
    tpu.vector_store %arg8[%c0_22, %c0_23], %36 {strides = array<i32>} : memref<8x128xbf16, #tpu.memory_space<vmem>>, vector<8x128xbf16>,
    return
  }
  func.func @transform_0(%arg0: i32) -> (i32, i32) {
    %c0_i32 = arith.constant 0 : i32
    %c0_i32_0 = arith.constant 0 : i32
    return %arg0, %c0_i32 : i32, i32
  }
  func.func @transform_1(%arg0: i32) -> (i32, i32) {
    %c0_i32 = arith.constant 0 : i32
    %c0_i32_0 = arith.constant 0 : i32
    %c0_i32_1 = arith.constant 0 : i32
    return %c0_i32, %c0_i32_0 : i32, i32
  }
  func.func @transform_2(%arg0: i32) -> (i32, i32) {
    %c0_i32 = arith.constant 0 : i32
    %c0_i32_0 = arith.constant 0 : i32
    %c0_i32_1 = arith.constant 0 : i32
    return %c0_i32, %c0_i32_0 : i32, i32
  }
  func.func @transform_3(%arg0: i32) -> (i32, i32) {
    %c0_i32 = arith.constant 0 : i32
    %c0_i32_0 = arith.constant 0 : i32
    %c0_i32_1 = arith.constant 0 : i32
    return %c0_i32, %c0_i32_0 : i32, i32
  }
  func.func @transform_4(%arg0: i32) -> (i32, i32) {
    %c0_i32 = arith.constant 0 : i32
    %c0_i32_0 = arith.constant 0 : i32
    %c0_i32_1 = arith.constant 0 : i32
    return %c0_i32, %c0_i32_0 : i32, i32
  }
  func.func @transform_5(%arg0: i32) -> (i32, i32) {
    %c0_i32 = arith.constant 0 : i32
    %c0_i32_0 = arith.constant 0 : i32
    %c0_i32_1 = arith.constant 0 : i32
    return %c0_i32, %c0_i32_0 : i32, i32
  }
  func.func @transform_6(%arg0: i32) -> (i32, i32) {
    %c0_i32 = arith.constant 0 : i32
    %c0_i32_0 = arith.constant 0 : i32
    %c0_i32_1 = arith.constant 0 : i32
    return %c0_i32, %c0_i32_0 : i32, i32
  }
  func.func @transform_7(%arg0: i32) -> (i32, i32) {
    %c0_i32 = arith.constant 0 : i32
    %c0_i32_0 = arith.constant 0 : i32
    return %arg0, %c0_i32 : i32, i32
  }
}

</mosaic_0001>

<llo_original>
// kernel: tpu_custom_call.1
$region0: #{tpu_custom_call.1}
  #allocation0 [shape = 'u32[]', space=smem, size = 0x4, offset = 0x4, fixed_abs, tag = 'smem constant byte address 0x4 - core index']
  #allocation1 [shape = 'u32[144,128]{1,0:T(1,128)}', space=vmem, size = 0x12000, scoped, tag = 'internal scratch']
  #allocation2 [shape = 'f32[1,1]{1,0:T(1,128)S(1)}', space=vmem, size = 0x200, scoped, tag = 'scoped memory for tpu_custom_call.1']
  %s0 = inlined_call_operand.hbm [shape: f32[16,784], index: 0, kind: input, shape index: {}]
  %s1 = inlined_call_operand.hbm [shape: bf16[784,512], index: 1, kind: input, shape index: {}]
  %s2 = inlined_call_operand.vmem [shape: f32[1,512], index: 2, kind: input, shape index: {}]
  %s3 = inlined_call_operand.hbm [shape: bf16[512,256], index: 3, kind: input, shape index: {}]
  %s4 = inlined_call_operand.vmem [shape: f32[1,256], index: 4, kind: input, shape index: {}]
  %s5 = inlined_call_operand.hbm [shape: bf16[256,128], index: 5, kind: input, shape index: {}]
  %s6 = inlined_call_operand.<no memory space> [shape: f32[1,1], index: 6, kind: input, shape index: {}]
  %s7 = inlined_call_operand.hbm [shape: bf16[16,128], index: 7, kind: output, shape index: {}]
  %s8 = sld [smem:[#allocation0]]
  $region77: #{tpu_custom_call.1} parent=0
    _
  %s10 = ssub.s32 1, %s8
  %s11 = scalar_select 0, %s10, %s8
  %v12 = vstv %s6
  %13 = vst [vmem:[#allocation2] sm:$0x1] %v12
  $region1: #{tpu_custom_call.1} parent=0
    #allocation3 [shape = 'u8[57344]{0}', space=vmem, size = 0xe000, scoped, tag = 'input window, operand 0']
    #allocation4 [shape = 's32[2]{0}', space=sflag, size = 0x8, scoped, tag = 'scoped memory for tpu_custom_call.1']
    #allocation5 [shape = 's32[2]{0}', space=sflag, size = 0x8, scoped, tag = 'scoped memory for tpu_custom_call.1']
    #allocation6 [shape = 'u8[802816]{0}', space=vmem, size = 0xc4000, scoped, tag = 'input window, operand 1, single buffered']
    #allocation7 [shape = 's32[1]{0}', space=sflag, size = 0x4, scoped, tag = 'scoped memory for tpu_custom_call.1']
    #allocation8 [shape = 'u8[262144]{0}', space=vmem, size = 0x40000, scoped, tag = 'input window, operand 3, single buffered']
    #allocation9 [shape = 'u8[65536]{0}', space=vmem, size = 0x10000, scoped, tag = 'input window, operand 5, single buffered']
    #allocation10 [shape = 's32[1]{0}', space=sflag, size = 0x4, scoped, tag = 'scoped memory for tpu_custom_call.1']
    #allocation11 [shape = 'u8[4096]{0}', space=vmem, size = 0x1000, scoped, tag = 'output window, operand 0']
    %14 = vsyncpa [#allocation4], 0
    %s15 = scalar_lea.sflag [#allocation4], 1
    %16 = vsyncpa %s15, 0
    %17 = vsyncpa [#allocation7], 0
    %18 = vsyncpa [#allocation10], 0
    %19 = vsyncpa [#allocation5], 0
    %s20 = scalar_lea.sflag [#allocation5], 1
    %21 = vsyncpa %s20, 0
    loop: start=0, step=1, limit=4
    $region2: #{tpu_custom_call.1} parent=1 // loop_pre_header
      _
    $region3: #{tpu_custom_call.1} parent=1 // loop_header
      %s23 = sphi 0, %s27
      %p24 = scmp.ge.s32.totalorder %s23, 4
      %s33 = sphi 0, %s35
      %s36 = sphi 0, %s33
      %s37 = sphi 0, %s36
      %s53 = sphi 0, %s37
      %s57 = sphi 0, %s57
      %s59 = sphi 0, %s57
      %s60 = sphi 0, %s59
      %s74 = sphi 0, %s60
      %s78 = sphi 0, %s78
      %s80 = sphi 0, %s78
      %s81 = sphi 0, %s80
      %s95 = sphi 0, %s81
      %s99 = sphi 0, %s99
      %s101 = sphi 0, %s99
      %s102 = sphi 0, %s101
      %s116 = sphi 0, %s102
      %s120 = sphi 0, %s120
      %s122 = sphi 0, %s120
      %s123 = sphi 0, %s122
      %s137 = sphi 0, %s123
      %s141 = sphi 0, %s141
      %s143 = sphi 0, %s141
      %s144 = sphi 0, %s143
      %s158 = sphi 0, %s144
      %s162 = sphi 0, %s162
      %s164 = sphi 0, %s162
      %s165 = sphi 0, %s164
      %s179 = sphi 0, %s165
      %s185 = sphi 0, %s187
      %s188 = sphi 0, %s185
      %s189 = sphi 0, %s188
      %s205 = sphi 0, %s189
    $region4: #{tpu_custom_call.1} parent=1 // loop_header_branch
      %26 = sbr.rel (%p24) target = $region8
    $region5: #{tpu_custom_call.1} parent=1 // loop_body
      %s28 = ssub.s32 %s23, 1
      %s29 = ssub.s32 %s23, 2
      %s30 = sadd.s32 %s23, 1
      %s31 = ssub.s32 %s23, %s30
      %p32 = scmp.eq.s32.totalorder %s31, 0
      %s34 = sadd.s32 %s33, 1
      %s35 = scalar_select %p32, %s33, %s34
      %p38 = pneg %p32
      %p39 = scmp.eq.s32.totalorder %s23, 1
      %p40 = por %p38, %p39
      %p41 = scmp.ne.s32.totalorder %s33, %s36
      %p42 = scmp.eq.s32.totalorder %s23, 0
      %p43 = por %p41, %p42
      %p44 = scmp.ne.s32.totalorder %s33, %s36
      %p45 = scmp.eq.s32.totalorder %s28, 1
      %p46 = por %p44, %p45
      %p47 = scmp.ne.s32.totalorder %s36, %s37
      %p48 = scmp.eq.s32.totalorder %s28, 0
      %p49 = por %p47, %p48
      %p50 = scmp.ne.s32.totalorder %s36, %s37
      %p51 = scmp.eq.s32.totalorder %s29, 1
      %p52 = por %p50, %p51
      %p54 = scmp.ne.s32.totalorder %s37, %s53
      %p55 = scmp.eq.s32.totalorder %s29, 0
      %p56 = por %p54, %p55
      %s58 = sadd.s32 %s57, 1
      %p61 = scmp.eq.s32.totalorder %s23, 1
      %p62 = scmp.ne.s32.totalorder %s57, %s59
      %p63 = scmp.eq.s32.totalorder %s23, 0
      %p64 = por %p62, %p63
      %p65 = scmp.ne.s32.totalorder %s57, %s59
      %p66 = scmp.eq.s32.totalorder %s28, 1
      %p67 = por %p65, %p66
      %p68 = scmp.ne.s32.totalorder %s59, %s60
      %p69 = scmp.eq.s32.totalorder %s28, 0
      %p70 = por %p68, %p69
      %p71 = scmp.ne.s32.totalorder %s59, %s60
      %p72 = scmp.eq.s32.totalorder %s29, 1
      %p73 = por %p71, %p72
      %p75 = scmp.ne.s32.totalorder %s60, %s74
      %p76 = scmp.eq.s32.totalorder %s29, 0
      %p77 = por %p75, %p76
      %s79 = sadd.s32 %s78, 1
      %p82 = scmp.eq.s32.totalorder %s23, 1
      %p83 = scmp.ne.s32.totalorder %s78, %s80
      %p84 = scmp.eq.s32.totalorder %s23, 0
      %p85 = por %p83, %p84
      %p86 = scmp.ne.s32.totalorder %s78, %s80
      %p87 = scmp.eq.s32.totalorder %s28, 1
      %p88 = por %p86, %p87
      %p89 = scmp.ne.s32.totalorder %s80, %s81
      %p90 = scmp.eq.s32.totalorder %s28, 0
      %p91 = por %p89, %p90
      %p92 = scmp.ne.s32.totalorder %s80, %s81
      %p93 = scmp.eq.s32.totalorder %s29, 1
      %p94 = por %p92, %p93
      %p96 = scmp.ne.s32.totalorder %s81, %s95
      %p97 = scmp.eq.s32.totalorder %s29, 0
      %p98 = por %p96, %p97
      %s100 = sadd.s32 %s99, 1
      %p103 = scmp.eq.s32.totalorder %s23, 1
      %p104 = scmp.ne.s32.totalorder %s99, %s101
      %p105 = scmp.eq.s32.totalorder %s23, 0
      %p106 = por %p104, %p105
      %p107 = scmp.ne.s32.totalorder %s99, %s101
      %p108 = scmp.eq.s32.totalorder %s28, 1
      %p109 = por %p107, %p108
      %p110 = scmp.ne.s32.totalorder %s101, %s102
      %p111 = scmp.eq.s32.totalorder %s28, 0
      %p112 = por %p110, %p111
      %p113 = scmp.ne.s32.totalorder %s101, %s102
      %p114 = scmp.eq.s32.totalorder %s29, 1
      %p115 = por %p113, %p114
      %p117 = scmp.ne.s32.totalorder %s102, %s116
      %p118 = scmp.eq.s32.totalorder %s29, 0
      %p119 = por %p117, %p118
      %s121 = sadd.s32 %s120, 1
      %p124 = scmp.eq.s32.totalorder %s23, 1
      %p125 = scmp.ne.s32.totalorder %s120, %s122
      %p126 = scmp.eq.s32.totalorder %s23, 0
      %p127 = por %p125, %p126
      %p128 = scmp.ne.s32.totalorder %s120, %s122
      %p129 = scmp.eq.s32.totalorder %s28, 1
      %p130 = por %p128, %p129
      %p131 = scmp.ne.s32.totalorder %s122, %s123
      %p132 = scmp.eq.s32.totalorder %s28, 0
      %p133 = por %p131, %p132
      %p134 = scmp.ne.s32.totalorder %s122, %s123
      %p135 = scmp.eq.s32.totalorder %s29, 1
      %p136 = por %p134, %p135
      %p138 = scmp.ne.s32.totalorder %s123, %s137
      %p139 = scmp.eq.s32.totalorder %s29, 0
      %p140 = por %p138, %p139
      %s142 = sadd.s32 %s141, 1
      %p145 = scmp.eq.s32.totalorder %s23, 1
      %p146 = scmp.ne.s32.totalorder %s141, %s143
      %p147 = scmp.eq.s32.totalorder %s23, 0
      %p148 = por %p146, %p147
      %p149 = scmp.ne.s32.totalorder %s141, %s143
      %p150 = scmp.eq.s32.totalorder %s28, 1
      %p151 = por %p149, %p150
      %p152 = scmp.ne.s32.totalorder %s143, %s144
      %p153 = scmp.eq.s32.totalorder %s28, 0
      %p154 = por %p152, %p153
      %p155 = scmp.ne.s32.totalorder %s143, %s144
      %p156 = scmp.eq.s32.totalorder %s29, 1
      %p157 = por %p155, %p156
      %p159 = scmp.ne.s32.totalorder %s144, %s158
      %p160 = scmp.eq.s32.totalorder %s29, 0
      %p161 = por %p159, %p160
      %s163 = sadd.s32 %s162, 1
      %p166 = scmp.eq.s32.totalorder %s23, 1
      %p167 = scmp.ne.s32.totalorder %s162, %s164
      %p168 = scmp.eq.s32.totalorder %s23, 0
      %p169 = por %p167, %p168
      %p170 = scmp.ne.s32.totalorder %s162, %s164
      %p171 = scmp.eq.s32.totalorder %s28, 1
      %p172 = por %p170, %p171
      %p173 = scmp.ne.s32.totalorder %s164, %s165
      %p174 = scmp.eq.s32.totalorder %s28, 0
      %p175 = por %p173, %p174
      %p176 = scmp.ne.s32.totalorder %s164, %s165
      %p177 = scmp.eq.s32.totalorder %s29, 1
      %p178 = por %p176, %p177
      %p180 = scmp.ne.s32.totalorder %s165, %s179
      %p181 = scmp.eq.s32.totalorder %s29, 0
      %p182 = por %p180, %p181
      %s183 = ssub.s32 %s23, %s30
      %p184 = scmp.eq.s32.totalorder %s183, 0
      %s186 = sadd.s32 %s185, 1
      %s187 = scalar_select %p184, %s185, %s186
      %p190 = pneg %p184
      %p191 = scmp.eq.s32.totalorder %s23, 1
      %p192 = por %p190, %p191
      %p193 = scmp.ne.s32.totalorder %s185, %s188
      %p194 = scmp.eq.s32.totalorder %s23, 0
      %p195 = por %p193, %p194
      %p196 = scmp.ne.s32.totalorder %s185, %s188
      %p197 = scmp.eq.s32.totalorder %s28, 1
      %p198 = por %p196, %p197
      %p199 = scmp.ne.s32.totalorder %s188, %s189
      %p200 = scmp.eq.s32.totalorder %s28, 0
      %p201 = por %p199, %p200
      %p202 = scmp.ne.s32.totalorder %s188, %s189
      %p203 = scmp.eq.s32.totalorder %s29, 1
      %p204 = por %p202, %p203
      %p206 = scmp.ne.s32.totalorder %s189, %s205
      %p207 = scmp.eq.s32.totalorder %s29, 0
      %p208 = por %p206, %p207
      %p209 = scmp.le.s32.totalorder 1, %s23
      %p210 = scmp.lt.s32.totalorder %s23, 3
      %p211 = pnand %p209, %p210
      %p212 = pneg %p211
      // Predicated region
      $region9: #{tpu_custom_call.1} parent=5 // pred_check
        _
      $region10: #{tpu_custom_call.1} parent=5 // pred_check_branch
        %214 = sbr.rel (%p211) target = $region12
      $region11: #{tpu_custom_call.1} parent=5 // pred_region
        %s215 = ssub.s32 %s23, 1
        // Predicated region
        $region13: #{tpu_custom_call.1} parent=11 // pred_check
          %p216 = pneg %p70
        $region14: #{tpu_custom_call.1} parent=11 // pred_check_branch
          %218 = sbr.rel (%p216) target = $region16
        $region15: #{tpu_custom_call.1} parent=11 // pred_region
          %s220 = ssub.s32 25088, 25088
          %221 = vsyncadd [#allocation7], %s220
          %s222 = sshll.u32 [#allocation6], 4
          %s223 = int_to_ptr.vmem [resolvable:$true] %s222
          %228 = dma.hbm_to_vmem [thread:$0]  %s1, 25088, %s223, [#allocation7], 256, 256, 16
        $region16: #{tpu_custom_call.1} parent=11 // pred_fallthru
          _
        // Predicated region
        $region17: #{tpu_custom_call.1} parent=11 // pred_check
          %p229 = pneg %p91
        $region18: #{tpu_custom_call.1} parent=11 // pred_check_branch
          %231 = sbr.rel (%p229) target = $region20
        $region19: #{tpu_custom_call.1} parent=11 // pred_region
          _
        $region20: #{tpu_custom_call.1} parent=11 // pred_fallthru
          _
        // Predicated region
        $region21: #{tpu_custom_call.1} parent=11 // pred_check
          %p232 = pneg %p112
        $region22: #{tpu_custom_call.1} parent=11 // pred_check_branch
          %234 = sbr.rel (%p232) target = $region24
        $region23: #{tpu_custom_call.1} parent=11 // pred_region
          %s236 = ssub.s32 8192, 8192
          %237 = vsyncadd [#allocation7], %s236
          %s238 = sshll.u32 [#allocation8], 4
          %s239 = int_to_ptr.vmem [resolvable:$true] %s238
          %244 = dma.hbm_to_vmem [thread:$0]  %s3, 8192, %s239, [#allocation7], 128, 128, 8
        $region24: #{tpu_custom_call.1} parent=11 // pred_fallthru
          _
        // Predicated region
        $region25: #{tpu_custom_call.1} parent=11 // pred_check
          %p245 = pneg %p133
        $region26: #{tpu_custom_call.1} parent=11 // pred_check_branch
          %247 = sbr.rel (%p245) target = $region28
        $region27: #{tpu_custom_call.1} parent=11 // pred_region
          _
        $region28: #{tpu_custom_call.1} parent=11 // pred_fallthru
          _
        // Predicated region
        $region29: #{tpu_custom_call.1} parent=11 // pred_check
          %p248 = pneg %p154
        $region30: #{tpu_custom_call.1} parent=11 // pred_check_branch
          %250 = sbr.rel (%p248) target = $region32
        $region31: #{tpu_custom_call.1} parent=11 // pred_region
          %s252 = ssub.s32 2048, 2048
          %253 = vsyncadd [#allocation10], %s252
          %s254 = sshll.u32 [#allocation9], 4
          %s255 = int_to_ptr.vmem [resolvable:$true] %s254
          %260 = dma.hbm_to_vmem [thread:$0]  %s5, 2048, %s255, [#allocation10], 64, 64, 4
        $region32: #{tpu_custom_call.1} parent=11 // pred_fallthru
          _
        // Predicated region
        $region33: #{tpu_custom_call.1} parent=11 // pred_check
          %p261 = pneg %p175
        $region34: #{tpu_custom_call.1} parent=11 // pred_check_branch
          %263 = sbr.rel (%p261) target = $region36
        $region35: #{tpu_custom_call.1} parent=11 // pred_region
          _
        $region36: #{tpu_custom_call.1} parent=11 // pred_fallthru
          _
      $region12: #{tpu_custom_call.1} parent=5 // pred_fallthru
        _
      %p264 = scmp.lt.s32.totalorder %s23, 2
      // Predicated region
      $region37: #{tpu_custom_call.1} parent=5 // pred_check
        %p265 = pneg %p264
      $region38: #{tpu_custom_call.1} parent=5 // pred_check_branch
        %267 = sbr.rel (%p265) target = $region40
      $region39: #{tpu_custom_call.1} parent=5 // pred_region
        // Predicated region
        $region41: #{tpu_custom_call.1} parent=39 // pred_check
          %p268 = pneg %p43
        $region42: #{tpu_custom_call.1} parent=39 // pred_check_branch
          %270 = sbr.rel (%p268) target = $region44
        $region43: #{tpu_custom_call.1} parent=39 // pred_region
          %s271 = sand.u32 %s33, 1
          %s272 = scalar_lea.sflag [#allocation4], %s271
          %s273 = sand.u32 %s33, 1
          %s274 = smul.addr %s273, 56
          %s275 = scalar_lea.vmem [#allocation3], %s274
          %s277 = ssub.s32 896, 896
          %278 = vsyncadd %s272, %s277
          %s279 = smul.addr %s23, 7
          %s280 = smul.addr %s279, 128
          %s281 = scalar_lea.hbm %s0, %s280
          %s283 = sshll.u32 %s275, 4
          %s284 = int_to_ptr.vmem [resolvable:$true] %s283
          %286 = dma.hbm_to_vmem [thread:$0]  %s281, 896, %s284, %s272
        $region44: #{tpu_custom_call.1} parent=39 // pred_fallthru
          _
      $region40: #{tpu_custom_call.1} parent=5 // pred_fallthru
        _
      %p287 = scmp.le.s32.totalorder 1, %s23
      %p288 = scmp.lt.s32.totalorder %s23, 3
      %p289 = pnand %p287, %p288
      %p290 = pneg %p289
      // Predicated region
      $region45: #{tpu_custom_call.1} parent=5 // pred_check
        _
      $region46: #{tpu_custom_call.1} parent=5 // pred_check_branch
        %292 = sbr.rel (%p289) target = $region48
      $region47: #{tpu_custom_call.1} parent=5 // pred_region
        %s293 = ssub.s32 %s23, 1
        %s294 = sand.u32 %s36, 1
        %s295 = scalar_lea.sflag [#allocation4], %s294
        %s296 = sand.u32 %s36, 1
        %s297 = smul.addr %s296, 56
        %s298 = scalar_lea.vmem [#allocation3], %s297
        // Predicated region
        $region49: #{tpu_custom_call.1} parent=47 // pred_check
          %p299 = pneg %p49
        $region50: #{tpu_custom_call.1} parent=47 // pred_check_branch
          %301 = sbr.rel (%p299) target = $region52
        $region51: #{tpu_custom_call.1} parent=47 // pred_region
          %302 = dma.done %s295, 896
        $region52: #{tpu_custom_call.1} parent=47 // pred_fallthru
          _
        // Predicated region
        $region53: #{tpu_custom_call.1} parent=47 // pred_check
          %p303 = pneg %p70
        $region54: #{tpu_custom_call.1} parent=47 // pred_check_branch
          %305 = sbr.rel (%p303) target = $region56
        $region55: #{tpu_custom_call.1} parent=47 // pred_region
          %306 = dma.done [#allocation7], 25088
        $region56: #{tpu_custom_call.1} parent=47 // pred_fallthru
          _
        // Predicated region
        $region57: #{tpu_custom_call.1} parent=47 // pred_check
          %p307 = pneg %p112
        $region58: #{tpu_custom_call.1} parent=47 // pred_check_branch
          %309 = sbr.rel (%p307) target = $region60
        $region59: #{tpu_custom_call.1} parent=47 // pred_region
          %310 = dma.done [#allocation7], 8192
        $region60: #{tpu_custom_call.1} parent=47 // pred_fallthru
          _
        // Predicated region
        $region61: #{tpu_custom_call.1} parent=47 // pred_check
          %p311 = pneg %p154
        $region62: #{tpu_custom_call.1} parent=47 // pred_check_branch
          %313 = sbr.rel (%p311) target = $region64
        $region63: #{tpu_custom_call.1} parent=47 // pred_region
          %314 = dma.done [#allocation10], 2048
        $region64: #{tpu_custom_call.1} parent=47 // pred_fallthru
          _
        %s315 = sand.u32 %s36, 1
        %s316 = scalar_lea.sflag [#allocation4], %s315
        %s317 = sand.u32 %s36, 1
        %s318 = smul.addr %s317, 56
        %s319 = scalar_lea.vmem [#allocation3], %s318
        %p320 = pneg %p49
        %p321 = pneg %p46
        %p322 = pneg %p70
        %p323 = pneg %p67
        %p324 = pneg %p91
        %p325 = pneg %p88
        %p326 = pneg %p112
        %p327 = pneg %p109
        %p328 = pneg %p133
        %p329 = pneg %p130
        %p330 = pneg %p154
        %p331 = pneg %p151
        %p332 = pneg %p175
        %p333 = pneg %p172
        %p334 = pneg %p201
        %p335 = pneg %p198
        %s336 = sand.u32 %s188, 1
        %s337 = scalar_lea.sflag [#allocation5], %s336
        %s338 = sand.u32 %s188, 1
        %s339 = smul.addr %s338, 4
        %s340 = scalar_lea.vmem [#allocation11], %s339
        %v342 = vld [vmem:[%s298] sm:$0xff]
        %v343 = vld [vmem:[%s298 + $0x8] sm:$0xff]
        %v344 = vld [vmem:[%s298 + $0x10] sm:$0xff]
        %v345 = vld [vmem:[%s298 + $0x18] sm:$0xff]
        %v346 = vld [vmem:[%s298 + $0x20] sm:$0xff]
        %v347 = vld [vmem:[%s298 + $0x28] sm:$0xff]
        %v348 = vld [vmem:[%s298 + $0x30] sm:$0xff]
        %v349 = vpack.c.bf16 %v342, %v342
        %v350 = vpack.c.bf16 %v343, %v343
        %v351 = vpack.c.bf16 %v344, %v344
        %v352 = vpack.c.bf16 %v345, %v345
        %v353 = vpack.c.bf16 %v346, %v346
        %v354 = vpack.c.bf16 %v347, %v347
        %v355 = vpack.c.bf16 %v348, %v348
        %v356 = vld [vmem:[#allocation6] sm:$0xff]
        %v357 = vld [vmem:[#allocation6 + $0x8] sm:$0xff]
        %v358 = vld [vmem:[#allocation6 + $0x10] sm:$0xff]
        %v359 = vld [vmem:[#allocation6 + $0x18] sm:$0xff]
        %v360 = vld [vmem:[#allocation6 + $0x20] sm:$0xff]
        %v361 = vld [vmem:[#allocation6 + $0x28] sm:$0xff]
        %v362 = vld [vmem:[#allocation6 + $0x30] sm:$0xff]
        %v363 = vld [vmem:[#allocation6 + $0x38] sm:$0xff]
        %v364 = vld [vmem:[#allocation6 + $0x40] sm:$0xff]
        %v365 = vld [vmem:[#allocation6 + $0x48] sm:$0xff]
        %v366 = vld [vmem:[#allocation6 + $0x50] sm:$0xff]
        %v367 = vld [vmem:[#allocation6 + $0x58] sm:$0xff]
        %v368 = vld [vmem:[#allocation6 + $0x60] sm:$0xff]
        %v369 = vld [vmem:[#allocation6 + $0x68] sm:$0xff]
        %v370 = vld [vmem:[#allocation6 + $0x70] sm:$0xff]
        %v371 = vld [vmem:[#allocation6 + $0x78] sm:$0xff]
        %v372 = vld [vmem:[#allocation6 + $0x80] sm:$0xff]
        %v373 = vld [vmem:[#allocation6 + $0x88] sm:$0xff]
        %v374 = vld [vmem:[#allocation6 + $0x90] sm:$0xff]
        %v375 = vld [vmem:[#allocation6 + $0x98] sm:$0xff]
        %v376 = vld [vmem:[#allocation6 + $0xa0] sm:$0xff]
        %v377 = vld [vmem:[#allocation6 + $0xa8] sm:$0xff]
        %v378 = vld [vmem:[#allocation6 + $0xb0] sm:$0xff]
        %v379 = vld [vmem:[#allocation6 + $0xb8] sm:$0xff]
        %v380 = vld [vmem:[#allocation6 + $0xc0] sm:$0xff]
        %v381 = vld [vmem:[#allocation6 + $0xc8] sm:$0xff]
        %v382 = vld [vmem:[#allocation6 + $0xd0] sm:$0xff]
        %v383 = vld [vmem:[#allocation6 + $0xd8] sm:$0xff]
        %v384 = vld [vmem:[#allocation6 + $0xe0] sm:$0xff]
        %v385 = vld [vmem:[#allocation6 + $0xe8] sm:$0xff]
        %v386 = vld [vmem:[#allocation6 + $0xf0] sm:$0xff]
        %v387 = vld [vmem:[#allocation6 + $0xf8] sm:$0xff]
        %v388 = vld [vmem:[#allocation6 + $0x100] sm:$0xff]
        %v389 = vld [vmem:[#allocation6 + $0x108] sm:$0xff]
        %v390 = vld [vmem:[#allocation6 + $0x110] sm:$0xff]
        %v391 = vld [vmem:[#allocation6 + $0x118] sm:$0xff]
        %v392 = vld [vmem:[#allocation6 + $0x120] sm:$0xff]
        %v393 = vld [vmem:[#allocation6 + $0x128] sm:$0xff]
        %v394 = vld [vmem:[#allocation6 + $0x130] sm:$0xff]
        %v395 = vld [vmem:[#allocation6 + $0x138] sm:$0xff]
        %v396 = vld [vmem:[#allocation6 + $0x140] sm:$0xff]
        %v397 = vld [vmem:[#allocation6 + $0x148] sm:$0xff]
        %v398 = vld [vmem:[#allocation6 + $0x150] sm:$0xff]
        %v399 = vld [vmem:[#allocation6 + $0x158] sm:$0xff]
        %v400 = vld [vmem:[#allocation6 + $0x160] sm:$0xff]
        %v401 = vld [vmem:[#allocation6 + $0x168] sm:$0xff]
        %v402 = vld [vmem:[#allocation6 + $0x170] sm:$0xff]
        %v403 = vld [vmem:[#allocation6 + $0x178] sm:$0xff]
        %v404 = vld [vmem:[#allocation6 + $0x180] sm:$0xff]
        %v405 = vld [vmem:[#allocation6 + $0x188] sm:$0xff]
        %v406 = vld [vmem:[#allocation6 + $0x190] sm:$0xff]
        %v407 = vld [vmem:[#allocation6 + $0x198] sm:$0xff]
        %v408 = vld [vmem:[#allocation6 + $0x1a0] sm:$0xff]
        %v409 = vld [vmem:[#allocation6 + $0x1a8] sm:$0xff]
        %v410 = vld [vmem:[#allocation6 + $0x1b0] sm:$0xff]
        %v411 = vld [vmem:[#allocation6 + $0x1b8] sm:$0xff]
        %v412 = vld [vmem:[#allocation6 + $0x1c0] sm:$0xff]
        %v413 = vld [vmem:[#allocation6 + $0x1c8] sm:$0xff]
        %v414 = vld [vmem:[#allocation6 + $0x1d0] sm:$0xff]
        %v415 = vld [vmem:[#allocation6 + $0x1d8] sm:$0xff]
        %v416 = vld [vmem:[#allocation6 + $0x1e0] sm:$0xff]
        %v417 = vld [vmem:[#allocation6 + $0x1e8] sm:$0xff]
        %v418 = vld [vmem:[#allocation6 + $0x1f0] sm:$0xff]
        %v419 = vld [vmem:[#allocation6 + $0x1f8] sm:$0xff]
        %v420 = vld [vmem:[#allocation6 + $0x200] sm:$0xff]
        %v421 = vld [vmem:[#allocation6 + $0x208] sm:$0xff]
        %v422 = vld [vmem:[#allocation6 + $0x210] sm:$0xff]
        %v423 = vld [vmem:[#allocation6 + $0x218] sm:$0xff]
        %v424 = vld [vmem:[#allocation6 + $0x220] sm:$0xff]
        %v425 = vld [vmem:[#allocation6 + $0x228] sm:$0xff]
        %v426 = vld [vmem:[#allocation6 + $0x230] sm:$0xff]
        %v427 = vld [vmem:[#allocation6 + $0x238] sm:$0xff]
        %v428 = vld [vmem:[#allocation6 + $0x240] sm:$0xff]
        %v429 = vld [vmem:[#allocation6 + $0x248] sm:$0xff]
        %v430 = vld [vmem:[#allocation6 + $0x250] sm:$0xff]
        %v431 = vld [vmem:[#allocation6 + $0x258] sm:$0xff]
        %v432 = vld [vmem:[#allocation6 + $0x260] sm:$0xff]
        %v433 = vld [vmem:[#allocation6 + $0x268] sm:$0xff]
        %v434 = vld [vmem:[#allocation6 + $0x270] sm:$0xff]
        %v435 = vld [vmem:[#allocation6 + $0x278] sm:$0xff]
        %v436 = vld [vmem:[#allocation6 + $0x280] sm:$0xff]
        %v437 = vld [vmem:[#allocation6 + $0x288] sm:$0xff]
        %v438 = vld [vmem:[#allocation6 + $0x290] sm:$0xff]
        %v439 = vld [vmem:[#allocation6 + $0x298] sm:$0xff]
        %v440 = vld [vmem:[#allocation6 + $0x2a0] sm:$0xff]
        %v441 = vld [vmem:[#allocation6 + $0x2a8] sm:$0xff]
        %v442 = vld [vmem:[#allocation6 + $0x2b0] sm:$0xff]
        %v443 = vld [vmem:[#allocation6 + $0x2b8] sm:$0xff]
        %v444 = vld [vmem:[#allocation6 + $0x2c0] sm:$0xff]
        %v445 = vld [vmem:[#allocation6 + $0x2c8] sm:$0xff]
        %v446 = vld [vmem:[#allocation6 + $0x2d0] sm:$0xff]
        %v447 = vld [vmem:[#allocation6 + $0x2d8] sm:$0xff]
        %v448 = vld [vmem:[#allocation6 + $0x2e0] sm:$0xff]
        %v449 = vld [vmem:[#allocation6 + $0x2e8] sm:$0xff]
        %v450 = vld [vmem:[#allocation6 + $0x2f0] sm:$0xff]
        %v451 = vld [vmem:[#allocation6 + $0x2f8] sm:$0xff]
        %v452 = vld [vmem:[#allocation6 + $0x300] sm:$0xff]
        %v453 = vld [vmem:[#allocation6 + $0x308] sm:$0xff]
        %v454 = vld [vmem:[#allocation6 + $0x310] sm:$0xff]
        %v455 = vld [vmem:[#allocation6 + $0x318] sm:$0xff]
        %v456 = vld [vmem:[#allocation6 + $0x320] sm:$0xff]
        %v457 = vld [vmem:[#allocation6 + $0x328] sm:$0xff]
        %v458 = vld [vmem:[#allocation6 + $0x330] sm:$0xff]
        %v459 = vld [vmem:[#allocation6 + $0x338] sm:$0xff]
        %v460 = vld [vmem:[#allocation6 + $0x340] sm:$0xff]
        %v461 = vld [vmem:[#allocation6 + $0x348] sm:$0xff]
        %v462 = vld [vmem:[#allocation6 + $0x350] sm:$0xff]
        %v463 = vld [vmem:[#allocation6 + $0x358] sm:$0xff]
        %v464 = vld [vmem:[#allocation6 + $0x360] sm:$0xff]
        %v465 = vld [vmem:[#allocation6 + $0x368] sm:$0xff]
        %v466 = vld [vmem:[#allocation6 + $0x370] sm:$0xff]
        %v467 = vld [vmem:[#allocation6 + $0x378] sm:$0xff]
        %v468 = vld [vmem:[#allocation6 + $0x380] sm:$0xff]
        %v469 = vld [vmem:[#allocation6 + $0x388] sm:$0xff]
        %v470 = vld [vmem:[#allocation6 + $0x390] sm:$0xff]
        %v471 = vld [vmem:[#allocation6 + $0x398] sm:$0xff]
        %v472 = vld [vmem:[#allocation6 + $0x3a0] sm:$0xff]
        %v473 = vld [vmem:[#allocation6 + $0x3a8] sm:$0xff]
        %v474 = vld [vmem:[#allocation6 + $0x3b0] sm:$0xff]
        %v475 = vld [vmem:[#allocation6 + $0x3b8] sm:$0xff]
        %v476 = vld [vmem:[#allocation6 + $0x3c0] sm:$0xff]
        %v477 = vld [vmem:[#allocation6 + $0x3c8] sm:$0xff]
        %v478 = vld [vmem:[#allocation6 + $0x3d0] sm:$0xff]
        %v479 = vld [vmem:[#allocation6 + $0x3d8] sm:$0xff]
        %v480 = vld [vmem:[#allocation6 + $0x3e0] sm:$0xff]
        %v481 = vld [vmem:[#allocation6 + $0x3e8] sm:$0xff]
        %v482 = vld [vmem:[#allocation6 + $0x3f0] sm:$0xff]
        %v483 = vld [vmem:[#allocation6 + $0x3f8] sm:$0xff]
        %v484 = vld [vmem:[#allocation6 + $0x400] sm:$0xff]
        %v485 = vld [vmem:[#allocation6 + $0x408] sm:$0xff]
        %v486 = vld [vmem:[#allocation6 + $0x410] sm:$0xff]
        %v487 = vld [vmem:[#allocation6 + $0x418] sm:$0xff]
        %v488 = vld [vmem:[#allocation6 + $0x420] sm:$0xff]
        %v489 = vld [vmem:[#allocation6 + $0x428] sm:$0xff]
        %v490 = vld [vmem:[#allocation6 + $0x430] sm:$0xff]
        %v491 = vld [vmem:[#allocation6 + $0x438] sm:$0xff]
        %v492 = vld [vmem:[#allocation6 + $0x440] sm:$0xff]
        %v493 = vld [vmem:[#allocation6 + $0x448] sm:$0xff]
        %v494 = vld [vmem:[#allocation6 + $0x450] sm:$0xff]
        %v495 = vld [vmem:[#allocation6 + $0x458] sm:$0xff]
        %v496 = vld [vmem:[#allocation6 + $0x460] sm:$0xff]
        %v497 = vld [vmem:[#allocation6 + $0x468] sm:$0xff]
        %v498 = vld [vmem:[#allocation6 + $0x470] sm:$0xff]
        %v499 = vld [vmem:[#allocation6 + $0x478] sm:$0xff]
        %v500 = vld [vmem:[#allocation6 + $0x480] sm:$0xff]
        %v501 = vld [vmem:[#allocation6 + $0x488] sm:$0xff]
        %v502 = vld [vmem:[#allocation6 + $0x490] sm:$0xff]
        %v503 = vld [vmem:[#allocation6 + $0x498] sm:$0xff]
        %v504 = vld [vmem:[#allocation6 + $0x4a0] sm:$0xff]
        %v505 = vld [vmem:[#allocation6 + $0x4a8] sm:$0xff]
        %v506 = vld [vmem:[#allocation6 + $0x4b0] sm:$0xff]
        %v507 = vld [vmem:[#allocation6 + $0x4b8] sm:$0xff]
        %v508 = vld [vmem:[#allocation6 + $0x4c0] sm:$0xff]
        %v509 = vld [vmem:[#allocation6 + $0x4c8] sm:$0xff]
        %v510 = vld [vmem:[#allocation6 + $0x4d0] sm:$0xff]
        %v511 = vld [vmem:[#allocation6 + $0x4d8] sm:$0xff]
        %v512 = vld [vmem:[#allocation6 + $0x4e0] sm:$0xff]
        %v513 = vld [vmem:[#allocation6 + $0x4e8] sm:$0xff]
        %v514 = vld [vmem:[#allocation6 + $0x4f0] sm:$0xff]
        %v515 = vld [vmem:[#allocation6 + $0x4f8] sm:$0xff]
        %v516 = vld [vmem:[#allocation6 + $0x500] sm:$0xff]
        %v517 = vld [vmem:[#allocation6 + $0x508] sm:$0xff]
        %v518 = vld [vmem:[#allocation6 + $0x510] sm:$0xff]
        %v519 = vld [vmem:[#allocation6 + $0x518] sm:$0xff]
        %v520 = vld [vmem:[#allocation6 + $0x520] sm:$0xff]
        %v521 = vld [vmem:[#allocation6 + $0x528] sm:$0xff]
        %v522 = vld [vmem:[#allocation6 + $0x530] sm:$0xff]
        %v523 = vld [vmem:[#allocation6 + $0x538] sm:$0xff]
        %v524 = vld [vmem:[#allocation6 + $0x540] sm:$0xff]
        %v525 = vld [vmem:[#allocation6 + $0x548] sm:$0xff]
        %v526 = vld [vmem:[#allocation6 + $0x550] sm:$0xff]
        %v527 = vld [vmem:[#allocation6 + $0x558] sm:$0xff]
        %v528 = vld [vmem:[#allocation6 + $0x560] sm:$0xff]
        %v529 = vld [vmem:[#allocation6 + $0x568] sm:$0xff]
        %v530 = vld [vmem:[#allocation6 + $0x570] sm:$0xff]
        %v531 = vld [vmem:[#allocation6 + $0x578] sm:$0xff]
        %v532 = vld [vmem:[#allocation6 + $0x580] sm:$0xff]
        %v533 = vld [vmem:[#allocation6 + $0x588] sm:$0xff]
        %v534 = vld [vmem:[#allocation6 + $0x590] sm:$0xff]
        %v535 = vld [vmem:[#allocation6 + $0x598] sm:$0xff]
        %v536 = vld [vmem:[#allocation6 + $0x5a0] sm:$0xff]
        %v537 = vld [vmem:[#allocation6 + $0x5a8] sm:$0xff]
        %v538 = vld [vmem:[#allocation6 + $0x5b0] sm:$0xff]
        %v539 = vld [vmem:[#allocation6 + $0x5b8] sm:$0xff]
        %v540 = vld [vmem:[#allocation6 + $0x5c0] sm:$0xff]
        %v541 = vld [vmem:[#allocation6 + $0x5c8] sm:$0xff]
        %v542 = vld [vmem:[#allocation6 + $0x5d0] sm:$0xff]
        %v543 = vld [vmem:[#allocation6 + $0x5d8] sm:$0xff]
        %v544 = vld [vmem:[#allocation6 + $0x5e0] sm:$0xff]
        %v545 = vld [vmem:[#allocation6 + $0x5e8] sm:$0xff]
        %v546 = vld [vmem:[#allocation6 + $0x5f0] sm:$0xff]
        %v547 = vld [vmem:[#allocation6 + $0x5f8] sm:$0xff]
        %v548 = vld [vmem:[#allocation6 + $0x600] sm:$0xff]
        %v549 = vld [vmem:[#allocation6 + $0x608] sm:$0xff]
        %v550 = vld [vmem:[#allocation6 + $0x610] sm:$0xff]
        %v551 = vld [vmem:[#allocation6 + $0x618] sm:$0xff]
        %v552 = vld [vmem:[%s2] sm:$0xf]
        %v554 = vlaneseq
        %v555 = vshrl.u32 %v554, 7
        %v556 = vsub.s32 0, %v555
        %v557 = vrot.slane %v552, %v556
        %v558 = vlaneseq
        %v559 = vshrl.u32 %v558, 7
        %v560 = vsub.s32 1, %v559
        %v561 = vrot.slane %v552, %v560
        %v562 = vlaneseq
        %v563 = vshrl.u32 %v562, 7
        %v564 = vsub.s32 2, %v563
        %v565 = vrot.slane %v552, %v564
        %v566 = vlaneseq
        %v567 = vshrl.u32 %v566, 7
        %v568 = vsub.s32 3, %v567
        %v569 = vrot.slane %v552, %v568
        %v770 = vunpack.c.l.b16 %v356
        %v771 = vunpack.c.h.b16 %v356
        %v772 = vunpack.c.l.b16 %v357
        %v773 = vunpack.c.h.b16 %v357
        %v774 = vunpack.c.l.b16 %v358
        %v775 = vunpack.c.h.b16 %v358
        %v776 = vunpack.c.l.b16 %v359
        %v777 = vunpack.c.h.b16 %v359
        %v778 = vunpack.c.l.b16 %v360
        %v779 = vunpack.c.h.b16 %v360
        %v780 = vunpack.c.l.b16 %v361
        %v781 = vunpack.c.h.b16 %v361
        %v782 = vunpack.c.l.b16 %v362
        %v783 = vunpack.c.h.b16 %v362
        %v784 = vunpack.c.l.b16 %v363
        %v785 = vunpack.c.h.b16 %v363
        %v786 = vunpack.c.l.b16 %v364
        %v787 = vunpack.c.h.b16 %v364
        %v788 = vunpack.c.l.b16 %v365
        %v789 = vunpack.c.h.b16 %v365
        %v790 = vunpack.c.l.b16 %v366
        %v791 = vunpack.c.h.b16 %v366
        %v792 = vunpack.c.l.b16 %v367
        %v793 = vunpack.c.h.b16 %v367
        %v794 = vunpack.c.l.b16 %v368
        %v795 = vunpack.c.h.b16 %v368
        %v796 = vunpack.c.l.b16 %v369
        %v797 = vunpack.c.h.b16 %v369
        %v798 = vunpack.c.l.b16 %v370
        %v799 = vunpack.c.h.b16 %v370
        %v800 = vunpack.c.l.b16 %v371
        %v801 = vunpack.c.h.b16 %v371
        %v802 = vunpack.c.l.b16 %v372
        %v803 = vunpack.c.h.b16 %v372
        %v804 = vunpack.c.l.b16 %v373
        %v805 = vunpack.c.h.b16 %v373
        %v806 = vunpack.c.l.b16 %v374
        %v807 = vunpack.c.h.b16 %v374
        %v808 = vunpack.c.l.b16 %v375
        %v809 = vunpack.c.h.b16 %v375
        %v810 = vunpack.c.l.b16 %v376
        %v811 = vunpack.c.h.b16 %v376
        %v812 = vunpack.c.l.b16 %v377
        %v813 = vunpack.c.h.b16 %v377
        %v814 = vunpack.c.l.b16 %v378
        %v815 = vunpack.c.h.b16 %v378
        %v816 = vunpack.c.l.b16 %v379
        %v817 = vunpack.c.h.b16 %v379
        %v818 = vunpack.c.l.b16 %v380
        %v819 = vunpack.c.h.b16 %v380
        %v820 = vunpack.c.l.b16 %v381
        %v821 = vunpack.c.h.b16 %v381
        %v822 = vunpack.c.l.b16 %v382
        %v823 = vunpack.c.h.b16 %v382
        %v824 = vunpack.c.l.b16 %v383
        %v825 = vunpack.c.h.b16 %v383
        %v826 = vunpack.c.l.b16 %v384
        %v827 = vunpack.c.h.b16 %v384
        %v828 = vunpack.c.l.b16 %v385
        %v829 = vunpack.c.h.b16 %v385
        %v830 = vunpack.c.l.b16 %v386
        %v831 = vunpack.c.h.b16 %v386
        %v832 = vunpack.c.l.b16 %v387
        %v833 = vunpack.c.h.b16 %v387
        %v834 = vunpack.c.l.b16 %v388
        %v835 = vunpack.c.h.b16 %v388
        %v836 = vunpack.c.l.b16 %v389
        %v837 = vunpack.c.h.b16 %v389
        %v838 = vunpack.c.l.b16 %v390
        %v839 = vunpack.c.h.b16 %v390
        %v840 = vunpack.c.l.b16 %v391
        %v841 = vunpack.c.h.b16 %v391
        %v842 = vunpack.c.l.b16 %v392
        %v843 = vunpack.c.h.b16 %v392
        %v844 = vunpack.c.l.b16 %v393
        %v845 = vunpack.c.h.b16 %v393
        %v846 = vunpack.c.l.b16 %v394
        %v847 = vunpack.c.h.b16 %v394
        %v848 = vunpack.c.l.b16 %v395
        %v849 = vunpack.c.h.b16 %v395
        %v850 = vunpack.c.l.b16 %v396
        %v851 = vunpack.c.h.b16 %v396
        %v852 = vunpack.c.l.b16 %v397
        %v853 = vunpack.c.h.b16 %v397
        %v854 = vunpack.c.l.b16 %v398
        %v855 = vunpack.c.h.b16 %v398
        %v856 = vunpack.c.l.b16 %v399
        %v857 = vunpack.c.h.b16 %v399
        %v858 = vunpack.c.l.b16 %v400
        %v859 = vunpack.c.h.b16 %v400
        %v860 = vunpack.c.l.b16 %v401
        %v861 = vunpack.c.h.b16 %v401
        %v862 = vunpack.c.l.b16 %v402
        %v863 = vunpack.c.h.b16 %v402
        %v864 = vunpack.c.l.b16 %v403
        %v865 = vunpack.c.h.b16 %v403
        %v866 = vunpack.c.l.b16 %v404
        %v867 = vunpack.c.h.b16 %v404
        %v868 = vunpack.c.l.b16 %v405
        %v869 = vunpack.c.h.b16 %v405
        %v870 = vunpack.c.l.b16 %v406
        %v871 = vunpack.c.h.b16 %v406
        %v872 = vunpack.c.l.b16 %v407
        %v873 = vunpack.c.h.b16 %v407
        %v874 = vunpack.c.l.b16 %v408
        %v875 = vunpack.c.h.b16 %v408
        %v876 = vunpack.c.l.b16 %v409
        %v877 = vunpack.c.h.b16 %v409
        %v878 = vunpack.c.l.b16 %v410
        %v879 = vunpack.c.h.b16 %v410
        %v880 = vunpack.c.l.b16 %v411
        %v881 = vunpack.c.h.b16 %v411
        %v882 = vunpack.c.l.b16 %v412
        %v883 = vunpack.c.h.b16 %v412
        %v884 = vunpack.c.l.b16 %v413
        %v885 = vunpack.c.h.b16 %v413
        %v886 = vunpack.c.l.b16 %v414
        %v887 = vunpack.c.h.b16 %v414
        %v888 = vunpack.c.l.b16 %v415
        %v889 = vunpack.c.h.b16 %v415
        %v890 = vunpack.c.l.b16 %v416
        %v891 = vunpack.c.h.b16 %v416
        %v892 = vunpack.c.l.b16 %v417
        %v893 = vunpack.c.h.b16 %v417
        %v894 = vunpack.c.l.b16 %v418
        %v895 = vunpack.c.h.b16 %v418
        %v896 = vunpack.c.l.b16 %v419
        %v897 = vunpack.c.h.b16 %v419
        %v898 = vunpack.c.l.b16 %v420
        %v899 = vunpack.c.h.b16 %v420
        %v900 = vunpack.c.l.b16 %v421
        %v901 = vunpack.c.h.b16 %v421
        %v902 = vunpack.c.l.b16 %v422
        %v903 = vunpack.c.h.b16 %v422
        %v904 = vunpack.c.l.b16 %v423
        %v905 = vunpack.c.h.b16 %v423
        %v906 = vunpack.c.l.b16 %v424
        %v907 = vunpack.c.h.b16 %v424
        %v908 = vunpack.c.l.b16 %v425
        %v909 = vunpack.c.h.b16 %v425
        %v910 = vunpack.c.l.b16 %v426
        %v911 = vunpack.c.h.b16 %v426
        %v912 = vunpack.c.l.b16 %v427
        %v913 = vunpack.c.h.b16 %v427
        %v914 = vunpack.c.l.b16 %v428
        %v915 = vunpack.c.h.b16 %v428
        %v916 = vunpack.c.l.b16 %v429
        %v917 = vunpack.c.h.b16 %v429
        %v918 = vunpack.c.l.b16 %v430
        %v919 = vunpack.c.h.b16 %v430
        %v920 = vunpack.c.l.b16 %v431
        %v921 = vunpack.c.h.b16 %v431
        %v922 = vunpack.c.l.b16 %v432
        %v923 = vunpack.c.h.b16 %v432
        %v924 = vunpack.c.l.b16 %v433
        %v925 = vunpack.c.h.b16 %v433
        %v926 = vunpack.c.l.b16 %v434
        %v927 = vunpack.c.h.b16 %v434
        %v928 = vunpack.c.l.b16 %v435
        %v929 = vunpack.c.h.b16 %v435
        %v930 = vunpack.c.l.b16 %v436
        %v931 = vunpack.c.h.b16 %v436
        %v932 = vunpack.c.l.b16 %v437
        %v933 = vunpack.c.h.b16 %v437
        %v934 = vunpack.c.l.b16 %v438
        %v935 = vunpack.c.h.b16 %v438
        %v936 = vunpack.c.l.b16 %v439
        %v937 = vunpack.c.h.b16 %v439
        %v938 = vunpack.c.l.b16 %v440
        %v939 = vunpack.c.h.b16 %v440
        %v940 = vunpack.c.l.b16 %v441
        %v941 = vunpack.c.h.b16 %v441
        %v942 = vunpack.c.l.b16 %v442
        %v943 = vunpack.c.h.b16 %v442
        %v944 = vunpack.c.l.b16 %v443
        %v945 = vunpack.c.h.b16 %v443
        %v946 = vunpack.c.l.b16 %v444
        %v947 = vunpack.c.h.b16 %v444
        %v948 = vunpack.c.l.b16 %v445
        %v949 = vunpack.c.h.b16 %v445
        %v950 = vunpack.c.l.b16 %v446
        %v951 = vunpack.c.h.b16 %v446
        %v952 = vunpack.c.l.b16 %v447
        %v953 = vunpack.c.h.b16 %v447
        %v954 = vunpack.c.l.b16 %v448
        %v955 = vunpack.c.h.b16 %v448
        %v956 = vunpack.c.l.b16 %v449
        %v957 = vunpack.c.h.b16 %v449
        %v958 = vunpack.c.l.b16 %v450
        %v959 = vunpack.c.h.b16 %v450
        %v960 = vunpack.c.l.b16 %v451
        %v961 = vunpack.c.h.b16 %v451
        %v962 = vunpack.c.l.b16 %v452
        %v963 = vunpack.c.h.b16 %v452
        %v964 = vunpack.c.l.b16 %v453
        %v965 = vunpack.c.h.b16 %v453
        %v966 = vunpack.c.l.b16 %v454
        %v967 = vunpack.c.h.b16 %v454
        %v968 = vunpack.c.l.b16 %v455
        %v969 = vunpack.c.h.b16 %v455
        %v970 = vunpack.c.l.b16 %v456
        %v971 = vunpack.c.h.b16 %v456
        %v972 = vunpack.c.l.b16 %v457
        %v973 = vunpack.c.h.b16 %v457
        %v974 = vunpack.c.l.b16 %v458
        %v975 = vunpack.c.h.b16 %v458
        %v976 = vunpack.c.l.b16 %v459
        %v977 = vunpack.c.h.b16 %v459
        %v978 = vunpack.c.l.b16 %v460
        %v979 = vunpack.c.h.b16 %v460
        %v980 = vunpack.c.l.b16 %v461
        %v981 = vunpack.c.h.b16 %v461
        %v982 = vunpack.c.l.b16 %v462
        %v983 = vunpack.c.h.b16 %v462
        %v984 = vunpack.c.l.b16 %v463
        %v985 = vunpack.c.h.b16 %v463
        %v986 = vunpack.c.l.b16 %v464
        %v987 = vunpack.c.h.b16 %v464
        %v988 = vunpack.c.l.b16 %v465
        %v989 = vunpack.c.h.b16 %v465
        %v990 = vunpack.c.l.b16 %v466
        %v991 = vunpack.c.h.b16 %v466
        %v992 = vunpack.c.l.b16 %v467
        %v993 = vunpack.c.h.b16 %v467
        %v994 = vunpack.c.l.b16 %v468
        %v995 = vunpack.c.h.b16 %v468
        %v996 = vunpack.c.l.b16 %v469
        %v997 = vunpack.c.h.b16 %v469
        %v998 = vunpack.c.l.b16 %v470
        %v999 = vunpack.c.h.b16 %v470
        %v1000 = vunpack.c.l.b16 %v471
        %v1001 = vunpack.c.h.b16 %v471
        %v1002 = vunpack.c.l.b16 %v472
        %v1003 = vunpack.c.h.b16 %v472
        %v1004 = vunpack.c.l.b16 %v473
        %v1005 = vunpack.c.h.b16 %v473
        %v1006 = vunpack.c.l.b16 %v474
        %v1007 = vunpack.c.h.b16 %v474
        %v1008 = vunpack.c.l.b16 %v475
        %v1009 = vunpack.c.h.b16 %v475
        %v1010 = vunpack.c.l.b16 %v476
        %v1011 = vunpack.c.h.b16 %v476
        %v1012 = vunpack.c.l.b16 %v477
        %v1013 = vunpack.c.h.b16 %v477
        %v1014 = vunpack.c.l.b16 %v478
        %v1015 = vunpack.c.h.b16 %v478
        %v1016 = vunpack.c.l.b16 %v479
        %v1017 = vunpack.c.h.b16 %v479
        %v1018 = vunpack.c.l.b16 %v480
        %v1019 = vunpack.c.h.b16 %v480
        %v1020 = vunpack.c.l.b16 %v481
        %v1021 = vunpack.c.h.b16 %v481
        %v1022 = vunpack.c.l.b16 %v482
        %v1023 = vunpack.c.h.b16 %v482
        %v1024 = vunpack.c.l.b16 %v483
        %v1025 = vunpack.c.h.b16 %v483
        %v1026 = vunpack.c.l.b16 %v484
        %v1027 = vunpack.c.h.b16 %v484
        %v1028 = vunpack.c.l.b16 %v485
        %v1029 = vunpack.c.h.b16 %v485
        %v1030 = vunpack.c.l.b16 %v486
        %v1031 = vunpack.c.h.b16 %v486
        %v1032 = vunpack.c.l.b16 %v487
        %v1033 = vunpack.c.h.b16 %v487
        %v1034 = vunpack.c.l.b16 %v488
        %v1035 = vunpack.c.h.b16 %v488
        %v1036 = vunpack.c.l.b16 %v489
        %v1037 = vunpack.c.h.b16 %v489
        %v1038 = vunpack.c.l.b16 %v490
        %v1039 = vunpack.c.h.b16 %v490
        %v1040 = vunpack.c.l.b16 %v491
        %v1041 = vunpack.c.h.b16 %v491
        %v1042 = vunpack.c.l.b16 %v492
        %v1043 = vunpack.c.h.b16 %v492
        %v1044 = vunpack.c.l.b16 %v493
        %v1045 = vunpack.c.h.b16 %v493
        %v1046 = vunpack.c.l.b16 %v494
        %v1047 = vunpack.c.h.b16 %v494
        %v1048 = vunpack.c.l.b16 %v495
        %v1049 = vunpack.c.h.b16 %v495
        %v1050 = vunpack.c.l.b16 %v496
        %v1051 = vunpack.c.h.b16 %v496
        %v1052 = vunpack.c.l.b16 %v497
        %v1053 = vunpack.c.h.b16 %v497
        %v1054 = vunpack.c.l.b16 %v498
        %v1055 = vunpack.c.h.b16 %v498
        %v1056 = vunpack.c.l.b16 %v499
        %v1057 = vunpack.c.h.b16 %v499
        %v1058 = vunpack.c.l.b16 %v500
        %v1059 = vunpack.c.h.b16 %v500
        %v1060 = vunpack.c.l.b16 %v501
        %v1061 = vunpack.c.h.b16 %v501
        %v1062 = vunpack.c.l.b16 %v502
        %v1063 = vunpack.c.h.b16 %v502
        %v1064 = vunpack.c.l.b16 %v503
        %v1065 = vunpack.c.h.b16 %v503
        %v1066 = vunpack.c.l.b16 %v504
        %v1067 = vunpack.c.h.b16 %v504
        %v1068 = vunpack.c.l.b16 %v505
        %v1069 = vunpack.c.h.b16 %v505
        %v1070 = vunpack.c.l.b16 %v506
        %v1071 = vunpack.c.h.b16 %v506
        %v1072 = vunpack.c.l.b16 %v507
        %v1073 = vunpack.c.h.b16 %v507
        %v1074 = vunpack.c.l.b16 %v508
        %v1075 = vunpack.c.h.b16 %v508
        %v1076 = vunpack.c.l.b16 %v509
        %v1077 = vunpack.c.h.b16 %v509
        %v1078 = vunpack.c.l.b16 %v510
        %v1079 = vunpack.c.h.b16 %v510
        %v1080 = vunpack.c.l.b16 %v511
        %v1081 = vunpack.c.h.b16 %v511
        %v1082 = vunpack.c.l.b16 %v512
        %v1083 = vunpack.c.h.b16 %v512
        %v1084 = vunpack.c.l.b16 %v513
        %v1085 = vunpack.c.h.b16 %v513
        %v1086 = vunpack.c.l.b16 %v514
        %v1087 = vunpack.c.h.b16 %v514
        %v1088 = vunpack.c.l.b16 %v515
        %v1089 = vunpack.c.h.b16 %v515
        %v1090 = vunpack.c.l.b16 %v516
        %v1091 = vunpack.c.h.b16 %v516
        %v1092 = vunpack.c.l.b16 %v517
        %v1093 = vunpack.c.h.b16 %v517
        %v1094 = vunpack.c.l.b16 %v518
        %v1095 = vunpack.c.h.b16 %v518
        %v1096 = vunpack.c.l.b16 %v519
        %v1097 = vunpack.c.h.b16 %v519
        %v1098 = vunpack.c.l.b16 %v520
        %v1099 = vunpack.c.h.b16 %v520
        %v1100 = vunpack.c.l.b16 %v521
        %v1101 = vunpack.c.h.b16 %v521
        %v1102 = vunpack.c.l.b16 %v522
        %v1103 = vunpack.c.h.b16 %v522
        %v1104 = vunpack.c.l.b16 %v523
        %v1105 = vunpack.c.h.b16 %v523
        %v1106 = vunpack.c.l.b16 %v524
        %v1107 = vunpack.c.h.b16 %v524
        %v1108 = vunpack.c.l.b16 %v525
        %v1109 = vunpack.c.h.b16 %v525
        %v1110 = vunpack.c.l.b16 %v526
        %v1111 = vunpack.c.h.b16 %v526
        %v1112 = vunpack.c.l.b16 %v527
        %v1113 = vunpack.c.h.b16 %v527
        %v1114 = vunpack.c.l.b16 %v528
        %v1115 = vunpack.c.h.b16 %v528
        %v1116 = vunpack.c.l.b16 %v529
        %v1117 = vunpack.c.h.b16 %v529
        %v1118 = vunpack.c.l.b16 %v530
        %v1119 = vunpack.c.h.b16 %v530
        %v1120 = vunpack.c.l.b16 %v531
        %v1121 = vunpack.c.h.b16 %v531
        %v1122 = vunpack.c.l.b16 %v532
        %v1123 = vunpack.c.h.b16 %v532
        %v1124 = vunpack.c.l.b16 %v533
        %v1125 = vunpack.c.h.b16 %v533
        %v1126 = vunpack.c.l.b16 %v534
        %v1127 = vunpack.c.h.b16 %v534
        %v1128 = vunpack.c.l.b16 %v535
        %v1129 = vunpack.c.h.b16 %v535
        %v1130 = vunpack.c.l.b16 %v536
        %v1131 = vunpack.c.h.b16 %v536
        %v1132 = vunpack.c.l.b16 %v537
        %v1133 = vunpack.c.h.b16 %v537
        %v1134 = vunpack.c.l.b16 %v538
        %v1135 = vunpack.c.h.b16 %v538
        %v1136 = vunpack.c.l.b16 %v539
        %v1137 = vunpack.c.h.b16 %v539
        %v1138 = vunpack.c.l.b16 %v540
        %v1139 = vunpack.c.h.b16 %v540
        %v1140 = vunpack.c.l.b16 %v541
        %v1141 = vunpack.c.h.b16 %v541
        %v1142 = vunpack.c.l.b16 %v542
        %v1143 = vunpack.c.h.b16 %v542
        %v1144 = vunpack.c.l.b16 %v543
        %v1145 = vunpack.c.h.b16 %v543
        %v1146 = vunpack.c.l.b16 %v544
        %v1147 = vunpack.c.h.b16 %v544
        %v1148 = vunpack.c.l.b16 %v545
        %v1149 = vunpack.c.h.b16 %v545
        %v1150 = vunpack.c.l.b16 %v546
        %v1151 = vunpack.c.h.b16 %v546
        %v1152 = vunpack.c.l.b16 %v547
        %v1153 = vunpack.c.h.b16 %v547
        %v1154 = vunpack.c.l.b16 %v548
        %v1155 = vunpack.c.h.b16 %v548
        %v1156 = vunpack.c.l.b16 %v549
        %v1157 = vunpack.c.h.b16 %v549
        %v1158 = vunpack.c.l.b16 %v550
        %v1159 = vunpack.c.h.b16 %v550
        %v1160 = vunpack.c.l.b16 %v551
        %v1161 = vunpack.c.h.b16 %v551
        %v1162 = vpack.c.b16 %v774, %v770
        %v1163 = vpack.c.b16 %v775, %v771
        %v1164 = vpack.c.b16 %v776, %v772
        %v1165 = vpack.c.b16 %v777, %v773
        %v1166 = vpack.c.b16 %v782, %v778
        %v1167 = vpack.c.b16 %v783, %v779
        %v1168 = vpack.c.b16 %v784, %v780
        %v1169 = vpack.c.b16 %v785, %v781
        %v1170 = vpack.c.b16 %v790, %v786
        %v1171 = vpack.c.b16 %v791, %v787
        %v1172 = vpack.c.b16 %v792, %v788
        %v1173 = vpack.c.b16 %v793, %v789
        %v1174 = vpack.c.b16 %v798, %v794
        %v1175 = vpack.c.b16 %v799, %v795
        %v1176 = vpack.c.b16 %v800, %v796
        %v1177 = vpack.c.b16 %v801, %v797
        %v1178 = vpack.c.b16 %v806, %v802
        %v1179 = vpack.c.b16 %v807, %v803
        %v1180 = vpack.c.b16 %v808, %v804
        %v1181 = vpack.c.b16 %v809, %v805
        %v1182 = vpack.c.b16 %v814, %v810
        %v1183 = vpack.c.b16 %v815, %v811
        %v1184 = vpack.c.b16 %v816, %v812
        %v1185 = vpack.c.b16 %v817, %v813
        %v1186 = vpack.c.b16 %v822, %v818
        %v1187 = vpack.c.b16 %v823, %v819
        %v1188 = vpack.c.b16 %v824, %v820
        %v1189 = vpack.c.b16 %v825, %v821
        %v1190 = vpack.c.b16 %v830, %v826
        %v1191 = vpack.c.b16 %v831, %v827
        %v1192 = vpack.c.b16 %v832, %v828
        %v1193 = vpack.c.b16 %v833, %v829
        %v1194 = vpack.c.b16 %v838, %v834
        %v1195 = vpack.c.b16 %v839, %v835
        %v1196 = vpack.c.b16 %v840, %v836
        %v1197 = vpack.c.b16 %v841, %v837
        %v1198 = vpack.c.b16 %v846, %v842
        %v1199 = vpack.c.b16 %v847, %v843
        %v1200 = vpack.c.b16 %v848, %v844
        %v1201 = vpack.c.b16 %v849, %v845
        %v1202 = vpack.c.b16 %v854, %v850
        %v1203 = vpack.c.b16 %v855, %v851
        %v1204 = vpack.c.b16 %v856, %v852
        %v1205 = vpack.c.b16 %v857, %v853
        %v1206 = vpack.c.b16 %v862, %v858
        %v1207 = vpack.c.b16 %v863, %v859
        %v1208 = vpack.c.b16 %v864, %v860
        %v1209 = vpack.c.b16 %v865, %v861
        %v1210 = vpack.c.b16 %v870, %v866
        %v1211 = vpack.c.b16 %v871, %v867
        %v1212 = vpack.c.b16 %v872, %v868
        %v1213 = vpack.c.b16 %v873, %v869
        %v1214 = vpack.c.b16 %v878, %v874
        %v1215 = vpack.c.b16 %v879, %v875
        %v1216 = vpack.c.b16 %v880, %v876
        %v1217 = vpack.c.b16 %v881, %v877
        %v1218 = vpack.c.b16 %v886, %v882
        %v1219 = vpack.c.b16 %v887, %v883
        %v1220 = vpack.c.b16 %v888, %v884
        %v1221 = vpack.c.b16 %v889, %v885
        %v1222 = vpack.c.b16 %v894, %v890
        %v1223 = vpack.c.b16 %v895, %v891
        %v1224 = vpack.c.b16 %v896, %v892
        %v1225 = vpack.c.b16 %v897, %v893
        %v1226 = vpack.c.b16 %v902, %v898
        %v1227 = vpack.c.b16 %v903, %v899
        %v1228 = vpack.c.b16 %v904, %v900
        %v1229 = vpack.c.b16 %v905, %v901
        %v1230 = vpack.c.b16 %v910, %v906
        %v1231 = vpack.c.b16 %v911, %v907
        %v1232 = vpack.c.b16 %v912, %v908
        %v1233 = vpack.c.b16 %v913, %v909
        %v1234 = vpack.c.b16 %v918, %v914
        %v1235 = vpack.c.b16 %v919, %v915
        %v1236 = vpack.c.b16 %v920, %v916
        %v1237 = vpack.c.b16 %v921, %v917
        %v1238 = vpack.c.b16 %v926, %v922
        %v1239 = vpack.c.b16 %v927, %v923
        %v1240 = vpack.c.b16 %v928, %v924
        %v1241 = vpack.c.b16 %v929, %v925
        %v1242 = vpack.c.b16 %v934, %v930
        %v1243 = vpack.c.b16 %v935, %v931
        %v1244 = vpack.c.b16 %v936, %v932
        %v1245 = vpack.c.b16 %v937, %v933
        %v1246 = vpack.c.b16 %v942, %v938
        %v1247 = vpack.c.b16 %v943, %v939
        %v1248 = vpack.c.b16 %v944, %v940
        %v1249 = vpack.c.b16 %v945, %v941
        %v1250 = vpack.c.b16 %v950, %v946
        %v1251 = vpack.c.b16 %v951, %v947
        %v1252 = vpack.c.b16 %v952, %v948
        %v1253 = vpack.c.b16 %v953, %v949
        %v1254 = vpack.c.b16 %v958, %v954
        %v1255 = vpack.c.b16 %v959, %v955
        %v1256 = vpack.c.b16 %v960, %v956
        %v1257 = vpack.c.b16 %v961, %v957
        %v1258 = vpack.c.b16 %v966, %v962
        %v1259 = vpack.c.b16 %v967, %v963
        %v1260 = vpack.c.b16 %v968, %v964
        %v1261 = vpack.c.b16 %v969, %v965
        %v1262 = vpack.c.b16 %v974, %v970
        %v1263 = vpack.c.b16 %v975, %v971
        %v1264 = vpack.c.b16 %v976, %v972
        %v1265 = vpack.c.b16 %v977, %v973
        %v1266 = vpack.c.b16 %v982, %v978
        %v1267 = vpack.c.b16 %v983, %v979
        %v1268 = vpack.c.b16 %v984, %v980
        %v1269 = vpack.c.b16 %v985, %v981
        %v1270 = vpack.c.b16 %v990, %v986
        %v1271 = vpack.c.b16 %v991, %v987
        %v1272 = vpack.c.b16 %v992, %v988
        %v1273 = vpack.c.b16 %v993, %v989
        %v1274 = vpack.c.b16 %v998, %v994
        %v1275 = vpack.c.b16 %v999, %v995
        %v1276 = vpack.c.b16 %v1000, %v996
        %v1277 = vpack.c.b16 %v1001, %v997
        %v1278 = vpack.c.b16 %v1006, %v1002
        %v1279 = vpack.c.b16 %v1007, %v1003
        %v1280 = vpack.c.b16 %v1008, %v1004
        %v1281 = vpack.c.b16 %v1009, %v1005
        %v1282 = vpack.c.b16 %v1014, %v1010
        %v1283 = vpack.c.b16 %v1015, %v1011
        %v1284 = vpack.c.b16 %v1016, %v1012
        %v1285 = vpack.c.b16 %v1017, %v1013
        %v1286 = vpack.c.b16 %v1022, %v1018
        %v1287 = vpack.c.b16 %v1023, %v1019
        %v1288 = vpack.c.b16 %v1024, %v1020
        %v1289 = vpack.c.b16 %v1025, %v1021
        %v1290 = vpack.c.b16 %v1030, %v1026
        %v1291 = vpack.c.b16 %v1031, %v1027
        %v1292 = vpack.c.b16 %v1032, %v1028
        %v1293 = vpack.c.b16 %v1033, %v1029
        %v1294 = vpack.c.b16 %v1038, %v1034
        %v1295 = vpack.c.b16 %v1039, %v1035
        %v1296 = vpack.c.b16 %v1040, %v1036
        %v1297 = vpack.c.b16 %v1041, %v1037
        %v1298 = vpack.c.b16 %v1046, %v1042
        %v1299 = vpack.c.b16 %v1047, %v1043
        %v1300 = vpack.c.b16 %v1048, %v1044
        %v1301 = vpack.c.b16 %v1049, %v1045
        %v1302 = vpack.c.b16 %v1054, %v1050
        %v1303 = vpack.c.b16 %v1055, %v1051
        %v1304 = vpack.c.b16 %v1056, %v1052
        %v1305 = vpack.c.b16 %v1057, %v1053
        %v1306 = vpack.c.b16 %v1062, %v1058
        %v1307 = vpack.c.b16 %v1063, %v1059
        %v1308 = vpack.c.b16 %v1064, %v1060
        %v1309 = vpack.c.b16 %v1065, %v1061
        %v1310 = vpack.c.b16 %v1070, %v1066
        %v1311 = vpack.c.b16 %v1071, %v1067
        %v1312 = vpack.c.b16 %v1072, %v1068
        %v1313 = vpack.c.b16 %v1073, %v1069
        %v1314 = vpack.c.b16 %v1078, %v1074
        %v1315 = vpack.c.b16 %v1079, %v1075
        %v1316 = vpack.c.b16 %v1080, %v1076
        %v1317 = vpack.c.b16 %v1081, %v1077
        %v1318 = vpack.c.b16 %v1086, %v1082
        %v1319 = vpack.c.b16 %v1087, %v1083
        %v1320 = vpack.c.b16 %v1088, %v1084
        %v1321 = vpack.c.b16 %v1089, %v1085
        %v1322 = vpack.c.b16 %v1094, %v1090
        %v1323 = vpack.c.b16 %v1095, %v1091
        %v1324 = vpack.c.b16 %v1096, %v1092
        %v1325 = vpack.c.b16 %v1097, %v1093
        %v1326 = vpack.c.b16 %v1102, %v1098
        %v1327 = vpack.c.b16 %v1103, %v1099
        %v1328 = vpack.c.b16 %v1104, %v1100
        %v1329 = vpack.c.b16 %v1105, %v1101
        %v1330 = vpack.c.b16 %v1110, %v1106
        %v1331 = vpack.c.b16 %v1111, %v1107
        %v1332 = vpack.c.b16 %v1112, %v1108
        %v1333 = vpack.c.b16 %v1113, %v1109
        %v1334 = vpack.c.b16 %v1118, %v1114
        %v1335 = vpack.c.b16 %v1119, %v1115
        %v1336 = vpack.c.b16 %v1120, %v1116
        %v1337 = vpack.c.b16 %v1121, %v1117
        %v1338 = vpack.c.b16 %v1126, %v1122
        %v1339 = vpack.c.b16 %v1127, %v1123
        %v1340 = vpack.c.b16 %v1128, %v1124
        %v1341 = vpack.c.b16 %v1129, %v1125
        %v1342 = vpack.c.b16 %v1134, %v1130
        %v1343 = vpack.c.b16 %v1135, %v1131
        %v1344 = vpack.c.b16 %v1136, %v1132
        %v1345 = vpack.c.b16 %v1137, %v1133
        %v1346 = vpack.c.b16 %v1142, %v1138
        %v1347 = vpack.c.b16 %v1143, %v1139
        %v1348 = vpack.c.b16 %v1144, %v1140
        %v1349 = vpack.c.b16 %v1145, %v1141
        %v1350 = vpack.c.b16 %v1150, %v1146
        %v1351 = vpack.c.b16 %v1151, %v1147
        %v1352 = vpack.c.b16 %v1152, %v1148
        %v1353 = vpack.c.b16 %v1153, %v1149
        %v1354 = vpack.c.b16 %v1158, %v1154
        %v1355 = vpack.c.b16 %v1159, %v1155
        %v1356 = vpack.c.b16 %v1160, %v1156
        %v1357 = vpack.c.b16 %v1161, %v1157
        %vm1554 = vcmask 130048
        %v1556 = vsel %vm1554, %v355, 0
        %1558 = vmatprep.subr.bf16.mxu0 %v1163
        %1559 = vmatpush1.bf16.msra.mxu0 %v1162
        %1560 = vmatprep.subr.bf16.mxu0 %v1167
        %1561 = vmatpush1.bf16.msra.mxu0 %v1166
        %1562 = vmatprep.subr.bf16.mxu0 %v1171
        %1563 = vmatpush1.bf16.msra.mxu0 %v1170
        %1564 = vmatprep.subr.bf16.mxu0 %v1175
        %1565 = vmatpush1.bf16.msra.mxu0 %v1174
        %1566 = vmatprep.subr.bf16.mxu0 %v1179
        %1567 = vmatpush1.bf16.msra.mxu0 %v1178
        %1568 = vmatprep.subr.bf16.mxu0 %v1183
        %1569 = vmatpush1.bf16.msra.mxu0 %v1182
        %1570 = vmatprep.subr.bf16.mxu0 %v1187
        %1571 = vmatpush1.bf16.msra.mxu0 %v1186
        %1572 = vmatprep.subr.bf16.mxu0 %v1191
        %1573 = vmatpush1.bf16.msra.mxu0 %v1190
        %1574 = vmatprep.subr.bf16.mxu0 %v1195
        %1575 = vmatpush1.bf16.msra.mxu0 %v1194
        %1576 = vmatprep.subr.bf16.mxu0 %v1199
        %1577 = vmatpush1.bf16.msra.mxu0 %v1198
        %1578 = vmatprep.subr.bf16.mxu0 %v1203
        %1579 = vmatpush1.bf16.msra.mxu0 %v1202
        %1580 = vmatprep.subr.bf16.mxu0 %v1207
        %1581 = vmatpush1.bf16.msra.mxu0 %v1206
        %1582 = vmatprep.subr.bf16.mxu0 %v1211
        %1583 = vmatpush1.bf16.msra.mxu0 %v1210
        %1584 = vmatprep.subr.bf16.mxu0 %v1215
        %1585 = vmatpush1.bf16.msra.mxu0 %v1214
        %1586 = vmatprep.subr.bf16.mxu0 %v1219
        %1587 = vmatpush1.bf16.msra.mxu0 %v1218
        %1588 = vmatprep.subr.bf16.mxu0 %v1223
        %1589 = vmatpush1.bf16.msra.mxu0 %v1222
        %1590 = vmatprep.mubr.bf16.mxu0 %v350
        %1591 = vmatmul.mubr.bf16.gmra.mrb[0].mxu0 %v349
        %v1592 = vpop.f32.mrb[0].mxu0
        %v1593 = vadd.f32 %v557, %v1592
        %v1594 = vpop.f32.mrb[0].mxu0
        %v1595 = vadd.f32 %v561, %v1594
        %v1596 = vpop.f32.mrb[0].mxu0
        %v1597 = vpop.f32.mrb[0].mxu0
        %1598 = vdwg.mxu0
        %1599 = vmatprep.subr.bf16.mxu0 %v1227
        %1600 = vmatpush1.bf16.msra.mxu0 %v1226
        %1601 = vmatprep.subr.bf16.mxu0 %v1231
        %1602 = vmatpush1.bf16.msra.mxu0 %v1230
        %1603 = vmatprep.subr.bf16.mxu0 %v1235
        %1604 = vmatpush1.bf16.msra.mxu0 %v1234
        %1605 = vmatprep.subr.bf16.mxu0 %v1239
        %1606 = vmatpush1.bf16.msra.mxu0 %v1238
        %1607 = vmatprep.subr.bf16.mxu0 %v1243
        %1608 = vmatpush1.bf16.msra.mxu0 %v1242
        %1609 = vmatprep.subr.bf16.mxu0 %v1247
        %1610 = vmatpush1.bf16.msra.mxu0 %v1246
        %1611 = vmatprep.subr.bf16.mxu0 %v1251
        %1612 = vmatpush1.bf16.msra.mxu0 %v1250
        %1613 = vmatprep.subr.bf16.mxu0 %v1255
        %1614 = vmatpush1.bf16.msra.mxu0 %v1254
        %1615 = vmatprep.subr.bf16.mxu0 %v1259
        %1616 = vmatpush1.bf16.msra.mxu0 %v1258
        %1617 = vmatprep.subr.bf16.mxu0 %v1263
        %1618 = vmatpush1.bf16.msra.mxu0 %v1262
        %1619 = vmatprep.subr.bf16.mxu0 %v1267
        %1620 = vmatpush1.bf16.msra.mxu0 %v1266
        %1621 = vmatprep.subr.bf16.mxu0 %v1271
        %1622 = vmatpush1.bf16.msra.mxu0 %v1270
        %1623 = vmatprep.subr.bf16.mxu0 %v1275
        %1624 = vmatpush1.bf16.msra.mxu0 %v1274
        %1625 = vmatprep.subr.bf16.mxu0 %v1279
        %1626 = vmatpush1.bf16.msra.mxu0 %v1278
        %1627 = vmatprep.subr.bf16.mxu0 %v1283
        %1628 = vmatpush1.bf16.msra.mxu0 %v1282
        %1629 = vmatprep.subr.bf16.mxu0 %v1287
        %1630 = vmatpush1.bf16.msra.mxu0 %v1286
        %1631 = vmatprep.mubr.bf16.mxu0 %v352
        %1632 = vmatmul.mubr.bf16.gmra.mrb[0].mxu0 %v351
        %v1633 = vpop.f32.mrb[0].mxu0
        %v1634 = vadd.f32 %v1593, %v1633
        %v1635 = vpop.f32.mrb[0].mxu0
        %v1636 = vadd.f32 %v1595, %v1635
        %v1637 = vpop.f32.mrb[0].mxu0
        %v1638 = vpop.f32.mrb[0].mxu0
        %1639 = vdwg.mxu0
        %1640 = vmatprep.subr.bf16.mxu0 %v1291
        %1641 = vmatpush1.bf16.msra.mxu0 %v1290
        %1642 = vmatprep.subr.bf16.mxu0 %v1295
        %1643 = vmatpush1.bf16.msra.mxu0 %v1294
        %1644 = vmatprep.subr.bf16.mxu0 %v1299
        %1645 = vmatpush1.bf16.msra.mxu0 %v1298
        %1646 = vmatprep.subr.bf16.mxu0 %v1303
        %1647 = vmatpush1.bf16.msra.mxu0 %v1302
        %1648 = vmatprep.subr.bf16.mxu0 %v1307
        %1649 = vmatpush1.bf16.msra.mxu0 %v1306
        %1650 = vmatprep.subr.bf16.mxu0 %v1311
        %1651 = vmatpush1.bf16.msra.mxu0 %v1310
        %1652 = vmatprep.subr.bf16.mxu0 %v1315
        %1653 = vmatpush1.bf16.msra.mxu0 %v1314
        %1654 = vmatprep.subr.bf16.mxu0 %v1319
        %1655 = vmatpush1.bf16.msra.mxu0 %v1318
        %1656 = vmatprep.subr.bf16.mxu0 %v1323
        %1657 = vmatpush1.bf16.msra.mxu0 %v1322
        %1658 = vmatprep.subr.bf16.mxu0 %v1327
        %1659 = vmatpush1.bf16.msra.mxu0 %v1326
        %1660 = vmatprep.subr.bf16.mxu0 %v1331
        %1661 = vmatpush1.bf16.msra.mxu0 %v1330
        %1662 = vmatprep.subr.bf16.mxu0 %v1335
        %1663 = vmatpush1.bf16.msra.mxu0 %v1334
        %1664 = vmatprep.subr.bf16.mxu0 %v1339
        %1665 = vmatpush1.bf16.msra.mxu0 %v1338
        %1666 = vmatprep.subr.bf16.mxu0 %v1343
        %1667 = vmatpush1.bf16.msra.mxu0 %v1342
        %1668 = vmatprep.subr.bf16.mxu0 %v1347
        %1669 = vmatpush1.bf16.msra.mxu0 %v1346
        %1670 = vmatprep.subr.bf16.mxu0 %v1351
        %1671 = vmatpush1.bf16.msra.mxu0 %v1350
        %1672 = vmatprep.mubr.bf16.mxu0 %v354
        %1673 = vmatmul.mubr.bf16.gmra.mrb[0].mxu0 %v353
        %v1674 = vpop.f32.mrb[0].mxu0
        %v1675 = vadd.f32 %v1634, %v1674
        %v1676 = vpop.f32.mrb[0].mxu0
        %v1677 = vadd.f32 %v1636, %v1676
        %v1678 = vpop.f32.mrb[0].mxu0
        %v1679 = vpop.f32.mrb[0].mxu0
        %1680 = vdwg.mxu0
        %1681 = vmatprep.subr.bf16.mxu0 %v1355
        %1682 = vmatpush1.bf16.msra.mxu0 %v1354
        %1683 = vmatprep.subr.bf16.mxu0 0
        %1684 = vmatpush1.bf16.msra.mxu0 0
        %1685 = vmatprep.subr.bf16.mxu0 0
        %1686 = vmatpush1.bf16.msra.mxu0 0
        %1687 = vmatprep.subr.bf16.mxu0 0
        %1688 = vmatpush1.bf16.msra.mxu0 0
        %1689 = vmatprep.subr.bf16.mxu0 0
        %1690 = vmatpush1.bf16.msra.mxu0 0
        %1691 = vmatprep.subr.bf16.mxu0 0
        %1692 = vmatpush1.bf16.msra.mxu0 0
        %1693 = vmatprep.subr.bf16.mxu0 0
        %1694 = vmatpush1.bf16.msra.mxu0 0
        %1695 = vmatprep.subr.bf16.mxu0 0
        %1696 = vmatpush1.bf16.msra.mxu0 0
        %1697 = vmatprep.subr.bf16.mxu0 0
        %1698 = vmatpush1.bf16.msra.mxu0 0
        %1699 = vmatprep.subr.bf16.mxu0 0
        %1700 = vmatpush1.bf16.msra.mxu0 0
        %1701 = vmatprep.subr.bf16.mxu0 0
        %1702 = vmatpush1.bf16.msra.mxu0 0
        %1703 = vmatprep.subr.bf16.mxu0 0
        %1704 = vmatpush1.bf16.msra.mxu0 0
        %1705 = vmatprep.subr.bf16.mxu0 0
        %1706 = vmatpush1.bf16.msra.mxu0 0
        %1707 = vmatprep.subr.bf16.mxu0 0
        %1708 = vmatpush1.bf16.msra.mxu0 0
        %1709 = vmatprep.subr.bf16.mxu0 0
        %1710 = vmatpush1.bf16.msra.mxu0 0
        %1711 = vmatprep.subr.bf16.mxu0 0
        %1712 = vmatpush1.bf16.msra.mxu0 0
        %1713 = vmatprep.mubr.bf16.mxu0 0
        %1714 = vmatmul.mubr.bf16.gmra.mrb[0].mxu0 %v1556
        %v1715 = vpop.f32.mrb[0].mxu0
        %v1716 = vadd.f32 %v1675, %v1715
        %v1717 = vpop.f32.mrb[0].mxu0
        %v1718 = vadd.f32 %v1677, %v1717
        %v1719 = vpop.f32.mrb[0].mxu0
        %v1720 = vpop.f32.mrb[0].mxu0
        %1721 = vdwg.mxu0
        %1722 = vmatprep.subr.bf16.mxu0 %v1165
        %1723 = vmatpush1.bf16.msra.mxu0 %v1164
        %1724 = vmatprep.subr.bf16.mxu0 %v1169
        %1725 = vmatpush1.bf16.msra.mxu0 %v1168
        %1726 = vmatprep.subr.bf16.mxu0 %v1173
        %1727 = vmatpush1.bf16.msra.mxu0 %v1172
        %1728 = vmatprep.subr.bf16.mxu0 %v1177
        %1729 = vmatpush1.bf16.msra.mxu0 %v1176
        %1730 = vmatprep.subr.bf16.mxu0 %v1181
        %1731 = vmatpush1.bf16.msra.mxu0 %v1180
        %1732 = vmatprep.subr.bf16.mxu0 %v1185
        %1733 = vmatpush1.bf16.msra.mxu0 %v1184
        %1734 = vmatprep.subr.bf16.mxu0 %v1189
        %1735 = vmatpush1.bf16.msra.mxu0 %v1188
        %1736 = vmatprep.subr.bf16.mxu0 %v1193
        %1737 = vmatpush1.bf16.msra.mxu0 %v1192
        %1738 = vmatprep.subr.bf16.mxu0 %v1197
        %1739 = vmatpush1.bf16.msra.mxu0 %v1196
        %1740 = vmatprep.subr.bf16.mxu0 %v1201
        %1741 = vmatpush1.bf16.msra.mxu0 %v1200
        %1742 = vmatprep.subr.bf16.mxu0 %v1205
        %1743 = vmatpush1.bf16.msra.mxu0 %v1204
        %1744 = vmatprep.subr.bf16.mxu0 %v1209
        %1745 = vmatpush1.bf16.msra.mxu0 %v1208
        %1746 = vmatprep.subr.bf16.mxu0 %v1213
        %1747 = vmatpush1.bf16.msra.mxu0 %v1212
        %1748 = vmatprep.subr.bf16.mxu0 %v1217
        %1749 = vmatpush1.bf16.msra.mxu0 %v1216
        %1750 = vmatprep.subr.bf16.mxu0 %v1221
        %1751 = vmatpush1.bf16.msra.mxu0 %v1220
        %1752 = vmatprep.subr.bf16.mxu0 %v1225
        %1753 = vmatpush1.bf16.msra.mxu0 %v1224
        %1754 = vmatprep.mubr.bf16.mxu0 %v350
        %1755 = vmatmul.mubr.bf16.gmra.mrb[0].mxu0 %v349
        %v1756 = vpop.f32.mrb[0].mxu0
        %v1757 = vadd.f32 %v565, %v1756
        %v1758 = vpop.f32.mrb[0].mxu0
        %v1759 = vadd.f32 %v569, %v1758
        %v1760 = vpop.f32.mrb[0].mxu0
        %v1761 = vpop.f32.mrb[0].mxu0
        %1762 = vdwg.mxu0
        %1763 = vmatprep.subr.bf16.mxu0 %v1229
        %1764 = vmatpush1.bf16.msra.mxu0 %v1228
        %1765 = vmatprep.subr.bf16.mxu0 %v1233
        %1766 = vmatpush1.bf16.msra.mxu0 %v1232
        %1767 = vmatprep.subr.bf16.mxu0 %v1237
        %1768 = vmatpush1.bf16.msra.mxu0 %v1236
        %1769 = vmatprep.subr.bf16.mxu0 %v1241
        %1770 = vmatpush1.bf16.msra.mxu0 %v1240
        %1771 = vmatprep.subr.bf16.mxu0 %v1245
        %1772 = vmatpush1.bf16.msra.mxu0 %v1244
        %1773 = vmatprep.subr.bf16.mxu0 %v1249
        %1774 = vmatpush1.bf16.msra.mxu0 %v1248
        %1775 = vmatprep.subr.bf16.mxu0 %v1253
        %1776 = vmatpush1.bf16.msra.mxu0 %v1252
        %1777 = vmatprep.subr.bf16.mxu0 %v1257
        %1778 = vmatpush1.bf16.msra.mxu0 %v1256
        %1779 = vmatprep.subr.bf16.mxu0 %v1261
        %1780 = vmatpush1.bf16.msra.mxu0 %v1260
        %1781 = vmatprep.subr.bf16.mxu0 %v1265
        %1782 = vmatpush1.bf16.msra.mxu0 %v1264
        %1783 = vmatprep.subr.bf16.mxu0 %v1269
        %1784 = vmatpush1.bf16.msra.mxu0 %v1268
        %1785 = vmatprep.subr.bf16.mxu0 %v1273
        %1786 = vmatpush1.bf16.msra.mxu0 %v1272
        %1787 = vmatprep.subr.bf16.mxu0 %v1277
        %1788 = vmatpush1.bf16.msra.mxu0 %v1276
        %1789 = vmatprep.subr.bf16.mxu0 %v1281
        %1790 = vmatpush1.bf16.msra.mxu0 %v1280
        %1791 = vmatprep.subr.bf16.mxu0 %v1285
        %1792 = vmatpush1.bf16.msra.mxu0 %v1284
        %1793 = vmatprep.subr.bf16.mxu0 %v1289
        %1794 = vmatpush1.bf16.msra.mxu0 %v1288
        %1795 = vmatprep.mubr.bf16.mxu0 %v352
        %1796 = vmatmul.mubr.bf16.gmra.mrb[0].mxu0 %v351
        %v1797 = vpop.f32.mrb[0].mxu0
        %v1798 = vadd.f32 %v1757, %v1797
        %v1799 = vpop.f32.mrb[0].mxu0
        %v1800 = vadd.f32 %v1759, %v1799
        %v1801 = vpop.f32.mrb[0].mxu0
        %v1802 = vpop.f32.mrb[0].mxu0
        %1803 = vdwg.mxu0
        %1804 = vmatprep.subr.bf16.mxu0 %v1293
        %1805 = vmatpush1.bf16.msra.mxu0 %v1292
        %1806 = vmatprep.subr.bf16.mxu0 %v1297
        %1807 = vmatpush1.bf16.msra.mxu0 %v1296
        %1808 = vmatprep.subr.bf16.mxu0 %v1301
        %1809 = vmatpush1.bf16.msra.mxu0 %v1300
        %1810 = vmatprep.subr.bf16.mxu0 %v1305
        %1811 = vmatpush1.bf16.msra.mxu0 %v1304
        %1812 = vmatprep.subr.bf16.mxu0 %v1309
        %1813 = vmatpush1.bf16.msra.mxu0 %v1308
        %1814 = vmatprep.subr.bf16.mxu0 %v1313
        %1815 = vmatpush1.bf16.msra.mxu0 %v1312
        %1816 = vmatprep.subr.bf16.mxu0 %v1317
        %1817 = vmatpush1.bf16.msra.mxu0 %v1316
        %1818 = vmatprep.subr.bf16.mxu0 %v1321
        %1819 = vmatpush1.bf16.msra.mxu0 %v1320
        %1820 = vmatprep.subr.bf16.mxu0 %v1325
        %1821 = vmatpush1.bf16.msra.mxu0 %v1324
        %1822 = vmatprep.subr.bf16.mxu0 %v1329
        %1823 = vmatpush1.bf16.msra.mxu0 %v1328
        %1824 = vmatprep.subr.bf16.mxu0 %v1333
        %1825 = vmatpush1.bf16.msra.mxu0 %v1332
        %1826 = vmatprep.subr.bf16.mxu0 %v1337
        %1827 = vmatpush1.bf16.msra.mxu0 %v1336
        %1828 = vmatprep.subr.bf16.mxu0 %v1341
        %1829 = vmatpush1.bf16.msra.mxu0 %v1340
        %1830 = vmatprep.subr.bf16.mxu0 %v1345
        %1831 = vmatpush1.bf16.msra.mxu0 %v1344
        %1832 = vmatprep.subr.bf16.mxu0 %v1349
        %1833 = vmatpush1.bf16.msra.mxu0 %v1348
        %1834 = vmatprep.subr.bf16.mxu0 %v1353
        %1835 = vmatpush1.bf16.msra.mxu0 %v1352
        %1836 = vmatprep.mubr.bf16.mxu0 %v354
        %1837 = vmatmul.mubr.bf16.gmra.mrb[0].mxu0 %v353
        %v1838 = vpop.f32.mrb[0].mxu0
        %v1839 = vadd.f32 %v1798, %v1838
        %v1840 = vpop.f32.mrb[0].mxu0
        %v1841 = vadd.f32 %v1800, %v1840
        %v1842 = vpop.f32.mrb[0].mxu0
        %v1843 = vpop.f32.mrb[0].mxu0
        %1844 = vdwg.mxu0
        %1845 = vmatprep.subr.bf16.mxu0 %v1357
        %1846 = vmatpush1.bf16.msra.mxu0 %v1356
        %1847 = vmatprep.subr.bf16.mxu0 0
        %1848 = vmatpush1.bf16.msra.mxu0 0
        %1849 = vmatprep.subr.bf16.mxu0 0
        %1850 = vmatpush1.bf16.msra.mxu0 0
        %1851 = vmatprep.subr.bf16.mxu0 0
        %1852 = vmatpush1.bf16.msra.mxu0 0
        %1853 = vmatprep.subr.bf16.mxu0 0
        %1854 = vmatpush1.bf16.msra.mxu0 0
        %1855 = vmatprep.subr.bf16.mxu0 0
        %1856 = vmatpush1.bf16.msra.mxu0 0
        %1857 = vmatprep.subr.bf16.mxu0 0
        %1858 = vmatpush1.bf16.msra.mxu0 0
        %1859 = vmatprep.subr.bf16.mxu0 0
        %1860 = vmatpush1.bf16.msra.mxu0 0
        %1861 = vmatprep.subr.bf16.mxu0 0
        %1862 = vmatpush1.bf16.msra.mxu0 0
        %1863 = vmatprep.subr.bf16.mxu0 0
        %1864 = vmatpush1.bf16.msra.mxu0 0
        %1865 = vmatprep.subr.bf16.mxu0 0
        %1866 = vmatpush1.bf16.msra.mxu0 0
        %1867 = vmatprep.subr.bf16.mxu0 0
        %1868 = vmatpush1.bf16.msra.mxu0 0
        %1869 = vmatprep.subr.bf16.mxu0 0
        %1870 = vmatpush1.bf16.msra.mxu0 0
        %1871 = vmatprep.subr.bf16.mxu0 0
        %1872 = vmatpush1.bf16.msra.mxu0 0
        %1873 = vmatprep.subr.bf16.mxu0 0
        %1874 = vmatpush1.bf16.msra.mxu0 0
        %1875 = vmatprep.subr.bf16.mxu0 0
        %1876 = vmatpush1.bf16.msra.mxu0 0
        %1877 = vmatprep.mubr.bf16.mxu0 0
        %1878 = vmatmul.mubr.bf16.gmra.mrb[0].mxu0 %v1556
        %v1879 = vpop.f32.mrb[0].mxu0
        %v1880 = vadd.f32 %v1839, %v1879
        %v1881 = vpop.f32.mrb[0].mxu0
        %v1882 = vadd.f32 %v1841, %v1881
        %v1883 = vpop.f32.mrb[0].mxu0
        %v1884 = vpop.f32.mrb[0].mxu0
        %1885 = vdwg.mxu0
        %vm1886 = vcmp.gt.f32.partialorder %v1716, 0.0
        %vm1887 = vcmp.gt.f32.partialorder %v1718, 0.0
        %vm1888 = vcmp.gt.f32.partialorder %v1880, 0.0
        %vm1889 = vcmp.gt.f32.partialorder %v1882, 0.0
        %v1890 = vmul.f32 %v1716, 0.2
        %v1891 = vmul.f32 %v1718, 0.2
        %v1892 = vmul.f32 %v1880, 0.2
        %v1893 = vmul.f32 %v1882, 0.2
        %v1894 = vsel %vm1886, %v1716, %v1890
        %v1895 = vsel %vm1887, %v1718, %v1891
        %v1896 = vsel %vm1888, %v1880, %v1892
        %v1897 = vsel %vm1889, %v1882, %v1893
        %v1898 = vpack.c.bf16 %v1894, %v1894
        %v1899 = vpack.c.bf16 %v1895, %v1895
        %v1900 = vpack.c.bf16 %v1896, %v1896
        %v1901 = vpack.c.bf16 %v1897, %v1897
        %v1902 = vld [vmem:[#allocation8] sm:$0xff]
        %v1903 = vld [vmem:[#allocation8 + $0x8] sm:$0xff]
        %v1904 = vld [vmem:[#allocation8 + $0x10] sm:$0xff]
        %v1905 = vld [vmem:[#allocation8 + $0x18] sm:$0xff]
        %v1906 = vld [vmem:[#allocation8 + $0x20] sm:$0xff]
        %v1907 = vld [vmem:[#allocation8 + $0x28] sm:$0xff]
        %v1908 = vld [vmem:[#allocation8 + $0x30] sm:$0xff]
        %v1909 = vld [vmem:[#allocation8 + $0x38] sm:$0xff]
        %v1910 = vld [vmem:[#allocation8 + $0x40] sm:$0xff]
        %v1911 = vld [vmem:[#allocation8 + $0x48] sm:$0xff]
        %v1912 = vld [vmem:[#allocation8 + $0x50] sm:$0xff]
        %v1913 = vld [vmem:[#allocation8 + $0x58] sm:$0xff]
        %v1914 = vld [vmem:[#allocation8 + $0x60] sm:$0xff]
        %v1915 = vld [vmem:[#allocation8 + $0x68] sm:$0xff]
        %v1916 = vld [vmem:[#allocation8 + $0x70] sm:$0xff]
        %v1917 = vld [vmem:[#allocation8 + $0x78] sm:$0xff]
        %v1918 = vld [vmem:[#allocation8 + $0x80] sm:$0xff]
        %v1919 = vld [vmem:[#allocation8 + $0x88] sm:$0xff]
        %v1920 = vld [vmem:[#allocation8 + $0x90] sm:$0xff]
        %v1921 = vld [vmem:[#allocation8 + $0x98] sm:$0xff]
        %v1922 = vld [vmem:[#allocation8 + $0xa0] sm:$0xff]
        %v1923 = vld [vmem:[#allocation8 + $0xa8] sm:$0xff]
        %v1924 = vld [vmem:[#allocation8 + $0xb0] sm:$0xff]
        %v1925 = vld [vmem:[#allocation8 + $0xb8] sm:$0xff]
        %v1926 = vld [vmem:[#allocation8 + $0xc0] sm:$0xff]
        %v1927 = vld [vmem:[#allocation8 + $0xc8] sm:$0xff]
        %v1928 = vld [vmem:[#allocation8 + $0xd0] sm:$0xff]
        %v1929 = vld [vmem:[#allocation8 + $0xd8] sm:$0xff]
        %v1930 = vld [vmem:[#allocation8 + $0xe0] sm:$0xff]
        %v1931 = vld [vmem:[#allocation8 + $0xe8] sm:$0xff]
        %v1932 = vld [vmem:[#allocation8 + $0xf0] sm:$0xff]
        %v1933 = vld [vmem:[#allocation8 + $0xf8] sm:$0xff]
        %v1934 = vld [vmem:[#allocation8 + $0x100] sm:$0xff]
        %v1935 = vld [vmem:[#allocation8 + $0x108] sm:$0xff]
        %v1936 = vld [vmem:[#allocation8 + $0x110] sm:$0xff]
        %v1937 = vld [vmem:[#allocation8 + $0x118] sm:$0xff]
        %v1938 = vld [vmem:[#allocation8 + $0x120] sm:$0xff]
        %v1939 = vld [vmem:[#allocation8 + $0x128] sm:$0xff]
        %v1940 = vld [vmem:[#allocation8 + $0x130] sm:$0xff]
        %v1941 = vld [vmem:[#allocation8 + $0x138] sm:$0xff]
        %v1942 = vld [vmem:[#allocation8 + $0x140] sm:$0xff]
        %v1943 = vld [vmem:[#allocation8 + $0x148] sm:$0xff]
        %v1944 = vld [vmem:[#allocation8 + $0x150] sm:$0xff]
        %v1945 = vld [vmem:[#allocation8 + $0x158] sm:$0xff]
        %v1946 = vld [vmem:[#allocation8 + $0x160] sm:$0xff]
        %v1947 = vld [vmem:[#allocation8 + $0x168] sm:$0xff]
        %v1948 = vld [vmem:[#allocation8 + $0x170] sm:$0xff]
        %v1949 = vld [vmem:[#allocation8 + $0x178] sm:$0xff]
        %v1950 = vld [vmem:[#allocation8 + $0x180] sm:$0xff]
        %v1951 = vld [vmem:[#allocation8 + $0x188] sm:$0xff]
        %v1952 = vld [vmem:[#allocation8 + $0x190] sm:$0xff]
        %v1953 = vld [vmem:[#allocation8 + $0x198] sm:$0xff]
        %v1954 = vld [vmem:[#allocation8 + $0x1a0] sm:$0xff]
        %v1955 = vld [vmem:[#allocation8 + $0x1a8] sm:$0xff]
        %v1956 = vld [vmem:[#allocation8 + $0x1b0] sm:$0xff]
        %v1957 = vld [vmem:[#allocation8 + $0x1b8] sm:$0xff]
        %v1958 = vld [vmem:[#allocation8 + $0x1c0] sm:$0xff]
        %v1959 = vld [vmem:[#allocation8 + $0x1c8] sm:$0xff]
        %v1960 = vld [vmem:[#allocation8 + $0x1d0] sm:$0xff]
        %v1961 = vld [vmem:[#allocation8 + $0x1d8] sm:$0xff]
        %v1962 = vld [vmem:[#allocation8 + $0x1e0] sm:$0xff]
        %v1963 = vld [vmem:[#allocation8 + $0x1e8] sm:$0xff]
        %v1964 = vld [vmem:[#allocation8 + $0x1f0] sm:$0xff]
        %v1965 = vld [vmem:[#allocation8 + $0x1f8] sm:$0xff]
        %v1966 = vld [vmem:[%s4] sm:$0x3]
        %v1968 = vlaneseq
        %v1969 = vshrl.u32 %v1968, 7
        %v1970 = vsub.s32 0, %v1969
        %v1971 = vrot.slane %v1966, %v1970
        %v1972 = vlaneseq
        %v1973 = vshrl.u32 %v1972, 7
        %v1974 = vsub.s32 1, %v1973
        %v1975 = vrot.slane %v1966, %v1974
        %v2042 = vunpack.c.l.b16 %v1902
        %v2043 = vunpack.c.h.b16 %v1902
        %v2044 = vunpack.c.l.b16 %v1903
        %v2045 = vunpack.c.h.b16 %v1903
        %v2046 = vunpack.c.l.b16 %v1904
        %v2047 = vunpack.c.h.b16 %v1904
        %v2048 = vunpack.c.l.b16 %v1905
        %v2049 = vunpack.c.h.b16 %v1905
        %v2050 = vunpack.c.l.b16 %v1906
        %v2051 = vunpack.c.h.b16 %v1906
        %v2052 = vunpack.c.l.b16 %v1907
        %v2053 = vunpack.c.h.b16 %v1907
        %v2054 = vunpack.c.l.b16 %v1908
        %v2055 = vunpack.c.h.b16 %v1908
        %v2056 = vunpack.c.l.b16 %v1909
        %v2057 = vunpack.c.h.b16 %v1909
        %v2058 = vunpack.c.l.b16 %v1910
        %v2059 = vunpack.c.h.b16 %v1910
        %v2060 = vunpack.c.l.b16 %v1911
        %v2061 = vunpack.c.h.b16 %v1911
        %v2062 = vunpack.c.l.b16 %v1912
        %v2063 = vunpack.c.h.b16 %v1912
        %v2064 = vunpack.c.l.b16 %v1913
        %v2065 = vunpack.c.h.b16 %v1913
        %v2066 = vunpack.c.l.b16 %v1914
        %v2067 = vunpack.c.h.b16 %v1914
        %v2068 = vunpack.c.l.b16 %v1915
        %v2069 = vunpack.c.h.b16 %v1915
        %v2070 = vunpack.c.l.b16 %v1916
        %v2071 = vunpack.c.h.b16 %v1916
        %v2072 = vunpack.c.l.b16 %v1917
        %v2073 = vunpack.c.h.b16 %v1917
        %v2074 = vunpack.c.l.b16 %v1918
        %v2075 = vunpack.c.h.b16 %v1918
        %v2076 = vunpack.c.l.b16 %v1919
        %v2077 = vunpack.c.h.b16 %v1919
        %v2078 = vunpack.c.l.b16 %v1920
        %v2079 = vunpack.c.h.b16 %v1920
        %v2080 = vunpack.c.l.b16 %v1921
        %v2081 = vunpack.c.h.b16 %v1921
        %v2082 = vunpack.c.l.b16 %v1922
        %v2083 = vunpack.c.h.b16 %v1922
        %v2084 = vunpack.c.l.b16 %v1923
        %v2085 = vunpack.c.h.b16 %v1923
        %v2086 = vunpack.c.l.b16 %v1924
        %v2087 = vunpack.c.h.b16 %v1924
        %v2088 = vunpack.c.l.b16 %v1925
        %v2089 = vunpack.c.h.b16 %v1925
        %v2090 = vunpack.c.l.b16 %v1926
        %v2091 = vunpack.c.h.b16 %v1926
        %v2092 = vunpack.c.l.b16 %v1927
        %v2093 = vunpack.c.h.b16 %v1927
        %v2094 = vunpack.c.l.b16 %v1928
        %v2095 = vunpack.c.h.b16 %v1928
        %v2096 = vunpack.c.l.b16 %v1929
        %v2097 = vunpack.c.h.b16 %v1929
        %v2098 = vunpack.c.l.b16 %v1930
        %v2099 = vunpack.c.h.b16 %v1930
        %v2100 = vunpack.c.l.b16 %v1931
        %v2101 = vunpack.c.h.b16 %v1931
        %v2102 = vunpack.c.l.b16 %v1932
        %v2103 = vunpack.c.h.b16 %v1932
        %v2104 = vunpack.c.l.b16 %v1933
        %v2105 = vunpack.c.h.b16 %v1933
        %v2106 = vunpack.c.l.b16 %v1934
        %v2107 = vunpack.c.h.b16 %v1934
        %v2108 = vunpack.c.l.b16 %v1935
        %v2109 = vunpack.c.h.b16 %v1935
        %v2110 = vunpack.c.l.b16 %v1936
        %v2111 = vunpack.c.h.b16 %v1936
        %v2112 = vunpack.c.l.b16 %v1937
        %v2113 = vunpack.c.h.b16 %v1937
        %v2114 = vunpack.c.l.b16 %v1938
        %v2115 = vunpack.c.h.b16 %v1938
        %v2116 = vunpack.c.l.b16 %v1939
        %v2117 = vunpack.c.h.b16 %v1939
        %v2118 = vunpack.c.l.b16 %v1940
        %v2119 = vunpack.c.h.b16 %v1940
        %v2120 = vunpack.c.l.b16 %v1941
        %v2121 = vunpack.c.h.b16 %v1941
        %v2122 = vunpack.c.l.b16 %v1942
        %v2123 = vunpack.c.h.b16 %v1942
        %v2124 = vunpack.c.l.b16 %v1943
        %v2125 = vunpack.c.h.b16 %v1943
        %v2126 = vunpack.c.l.b16 %v1944
        %v2127 = vunpack.c.h.b16 %v1944
        %v2128 = vunpack.c.l.b16 %v1945
        %v2129 = vunpack.c.h.b16 %v1945
        %v2130 = vunpack.c.l.b16 %v1946
        %v2131 = vunpack.c.h.b16 %v1946
        %v2132 = vunpack.c.l.b16 %v1947
        %v2133 = vunpack.c.h.b16 %v1947
        %v2134 = vunpack.c.l.b16 %v1948
        %v2135 = vunpack.c.h.b16 %v1948
        %v2136 = vunpack.c.l.b16 %v1949
        %v2137 = vunpack.c.h.b16 %v1949
        %v2138 = vunpack.c.l.b16 %v1950
        %v2139 = vunpack.c.h.b16 %v1950
        %v2140 = vunpack.c.l.b16 %v1951
        %v2141 = vunpack.c.h.b16 %v1951
        %v2142 = vunpack.c.l.b16 %v1952
        %v2143 = vunpack.c.h.b16 %v1952
        %v2144 = vunpack.c.l.b16 %v1953
        %v2145 = vunpack.c.h.b16 %v1953
        %v2146 = vunpack.c.l.b16 %v1954
        %v2147 = vunpack.c.h.b16 %v1954
        %v2148 = vunpack.c.l.b16 %v1955
        %v2149 = vunpack.c.h.b16 %v1955
        %v2150 = vunpack.c.l.b16 %v1956
        %v2151 = vunpack.c.h.b16 %v1956
        %v2152 = vunpack.c.l.b16 %v1957
        %v2153 = vunpack.c.h.b16 %v1957
        %v2154 = vunpack.c.l.b16 %v1958
        %v2155 = vunpack.c.h.b16 %v1958
        %v2156 = vunpack.c.l.b16 %v1959
        %v2157 = vunpack.c.h.b16 %v1959
        %v2158 = vunpack.c.l.b16 %v1960
        %v2159 = vunpack.c.h.b16 %v1960
        %v2160 = vunpack.c.l.b16 %v1961
        %v2161 = vunpack.c.h.b16 %v1961
        %v2162 = vunpack.c.l.b16 %v1962
        %v2163 = vunpack.c.h.b16 %v1962
        %v2164 = vunpack.c.l.b16 %v1963
        %v2165 = vunpack.c.h.b16 %v1963
        %v2166 = vunpack.c.l.b16 %v1964
        %v2167 = vunpack.c.h.b16 %v1964
        %v2168 = vunpack.c.l.b16 %v1965
        %v2169 = vunpack.c.h.b16 %v1965
        %v2170 = vpack.c.b16 %v2044, %v2042
        %v2171 = vpack.c.b16 %v2045, %v2043
        %v2172 = vpack.c.b16 %v2048, %v2046
        %v2173 = vpack.c.b16 %v2049, %v2047
        %v2174 = vpack.c.b16 %v2052, %v2050
        %v2175 = vpack.c.b16 %v2053, %v2051
        %v2176 = vpack.c.b16 %v2056, %v2054
        %v2177 = vpack.c.b16 %v2057, %v2055
        %v2178 = vpack.c.b16 %v2060, %v2058
        %v2179 = vpack.c.b16 %v2061, %v2059
        %v2180 = vpack.c.b16 %v2064, %v2062
        %v2181 = vpack.c.b16 %v2065, %v2063
        %v2182 = vpack.c.b16 %v2068, %v2066
        %v2183 = vpack.c.b16 %v2069, %v2067
        %v2184 = vpack.c.b16 %v2072, %v2070
        %v2185 = vpack.c.b16 %v2073, %v2071
        %v2186 = vpack.c.b16 %v2076, %v2074
        %v2187 = vpack.c.b16 %v2077, %v2075
        %v2188 = vpack.c.b16 %v2080, %v2078
        %v2189 = vpack.c.b16 %v2081, %v2079
        %v2190 = vpack.c.b16 %v2084, %v2082
        %v2191 = vpack.c.b16 %v2085, %v2083
        %v2192 = vpack.c.b16 %v2088, %v2086
        %v2193 = vpack.c.b16 %v2089, %v2087
        %v2194 = vpack.c.b16 %v2092, %v2090
        %v2195 = vpack.c.b16 %v2093, %v2091
        %v2196 = vpack.c.b16 %v2096, %v2094
        %v2197 = vpack.c.b16 %v2097, %v2095
        %v2198 = vpack.c.b16 %v2100, %v2098
        %v2199 = vpack.c.b16 %v2101, %v2099
        %v2200 = vpack.c.b16 %v2104, %v2102
        %v2201 = vpack.c.b16 %v2105, %v2103
        %v2202 = vpack.c.b16 %v2108, %v2106
        %v2203 = vpack.c.b16 %v2109, %v2107
        %v2204 = vpack.c.b16 %v2112, %v2110
        %v2205 = vpack.c.b16 %v2113, %v2111
        %v2206 = vpack.c.b16 %v2116, %v2114
        %v2207 = vpack.c.b16 %v2117, %v2115
        %v2208 = vpack.c.b16 %v2120, %v2118
        %v2209 = vpack.c.b16 %v2121, %v2119
        %v2210 = vpack.c.b16 %v2124, %v2122
        %v2211 = vpack.c.b16 %v2125, %v2123
        %v2212 = vpack.c.b16 %v2128, %v2126
        %v2213 = vpack.c.b16 %v2129, %v2127
        %v2214 = vpack.c.b16 %v2132, %v2130
        %v2215 = vpack.c.b16 %v2133, %v2131
        %v2216 = vpack.c.b16 %v2136, %v2134
        %v2217 = vpack.c.b16 %v2137, %v2135
        %v2218 = vpack.c.b16 %v2140, %v2138
        %v2219 = vpack.c.b16 %v2141, %v2139
        %v2220 = vpack.c.b16 %v2144, %v2142
        %v2221 = vpack.c.b16 %v2145, %v2143
        %v2222 = vpack.c.b16 %v2148, %v2146
        %v2223 = vpack.c.b16 %v2149, %v2147
        %v2224 = vpack.c.b16 %v2152, %v2150
        %v2225 = vpack.c.b16 %v2153, %v2151
        %v2226 = vpack.c.b16 %v2156, %v2154
        %v2227 = vpack.c.b16 %v2157, %v2155
        %v2228 = vpack.c.b16 %v2160, %v2158
        %v2229 = vpack.c.b16 %v2161, %v2159
        %v2230 = vpack.c.b16 %v2164, %v2162
        %v2231 = vpack.c.b16 %v2165, %v2163
        %v2232 = vpack.c.b16 %v2168, %v2166
        %v2233 = vpack.c.b16 %v2169, %v2167
        %2298 = vmatprep.subr.bf16.mxu0 %v2171
        %2299 = vmatpush1.bf16.msra.mxu0 %v2170
        %2300 = vmatprep.subr.bf16.mxu0 %v2173
        %2301 = vmatpush1.bf16.msra.mxu0 %v2172
        %2302 = vmatprep.subr.bf16.mxu0 %v2175
        %2303 = vmatpush1.bf16.msra.mxu0 %v2174
        %2304 = vmatprep.subr.bf16.mxu0 %v2177
        %2305 = vmatpush1.bf16.msra.mxu0 %v2176
        %2306 = vmatprep.subr.bf16.mxu0 %v2179
        %2307 = vmatpush1.bf16.msra.mxu0 %v2178
        %2308 = vmatprep.subr.bf16.mxu0 %v2181
        %2309 = vmatpush1.bf16.msra.mxu0 %v2180
        %2310 = vmatprep.subr.bf16.mxu0 %v2183
        %2311 = vmatpush1.bf16.msra.mxu0 %v2182
        %2312 = vmatprep.subr.bf16.mxu0 %v2185
        %2313 = vmatpush1.bf16.msra.mxu0 %v2184
        %2314 = vmatprep.subr.bf16.mxu0 %v2187
        %2315 = vmatpush1.bf16.msra.mxu0 %v2186
        %2316 = vmatprep.subr.bf16.mxu0 %v2189
        %2317 = vmatpush1.bf16.msra.mxu0 %v2188
        %2318 = vmatprep.subr.bf16.mxu0 %v2191
        %2319 = vmatpush1.bf16.msra.mxu0 %v2190
        %2320 = vmatprep.subr.bf16.mxu0 %v2193
        %2321 = vmatpush1.bf16.msra.mxu0 %v2192
        %2322 = vmatprep.subr.bf16.mxu0 %v2195
        %2323 = vmatpush1.bf16.msra.mxu0 %v2194
        %2324 = vmatprep.subr.bf16.mxu0 %v2197
        %2325 = vmatpush1.bf16.msra.mxu0 %v2196
        %2326 = vmatprep.subr.bf16.mxu0 %v2199
        %2327 = vmatpush1.bf16.msra.mxu0 %v2198
        %2328 = vmatprep.subr.bf16.mxu0 %v2201
        %2329 = vmatpush1.bf16.msra.mxu0 %v2200
        %2330 = vmatprep.mubr.bf16.mxu0 %v1899
        %2331 = vmatmul.mubr.bf16.gmra.mrb[0].mxu0 %v1898
        %v2332 = vpop.f32.mrb[0].mxu0
        %v2333 = vadd.f32 %v1971, %v2332
        %v2334 = vpop.f32.mrb[0].mxu0
        %v2335 = vadd.f32 %v1975, %v2334
        %v2336 = vpop.f32.mrb[0].mxu0
        %v2337 = vpop.f32.mrb[0].mxu0
        %2338 = vdwg.mxu0
        %2339 = vmatprep.subr.bf16.mxu0 %v2203
        %2340 = vmatpush1.bf16.msra.mxu0 %v2202
        %2341 = vmatprep.subr.bf16.mxu0 %v2205
        %2342 = vmatpush1.bf16.msra.mxu0 %v2204
        %2343 = vmatprep.subr.bf16.mxu0 %v2207
        %2344 = vmatpush1.bf16.msra.mxu0 %v2206
        %2345 = vmatprep.subr.bf16.mxu0 %v2209
        %2346 = vmatpush1.bf16.msra.mxu0 %v2208
        %2347 = vmatprep.subr.bf16.mxu0 %v2211
        %2348 = vmatpush1.bf16.msra.mxu0 %v2210
        %2349 = vmatprep.subr.bf16.mxu0 %v2213
        %2350 = vmatpush1.bf16.msra.mxu0 %v2212
        %2351 = vmatprep.subr.bf16.mxu0 %v2215
        %2352 = vmatpush1.bf16.msra.mxu0 %v2214
        %2353 = vmatprep.subr.bf16.mxu0 %v2217
        %2354 = vmatpush1.bf16.msra.mxu0 %v2216
        %2355 = vmatprep.subr.bf16.mxu0 %v2219
        %2356 = vmatpush1.bf16.msra.mxu0 %v2218
        %2357 = vmatprep.subr.bf16.mxu0 %v2221
        %2358 = vmatpush1.bf16.msra.mxu0 %v2220
        %2359 = vmatprep.subr.bf16.mxu0 %v2223
        %2360 = vmatpush1.bf16.msra.mxu0 %v2222
        %2361 = vmatprep.subr.bf16.mxu0 %v2225
        %2362 = vmatpush1.bf16.msra.mxu0 %v2224
        %2363 = vmatprep.subr.bf16.mxu0 %v2227
        %2364 = vmatpush1.bf16.msra.mxu0 %v2226
        %2365 = vmatprep.subr.bf16.mxu0 %v2229
        %2366 = vmatpush1.bf16.msra.mxu0 %v2228
        %2367 = vmatprep.subr.bf16.mxu0 %v2231
        %2368 = vmatpush1.bf16.msra.mxu0 %v2230
        %2369 = vmatprep.subr.bf16.mxu0 %v2233
        %2370 = vmatpush1.bf16.msra.mxu0 %v2232
        %2371 = vmatprep.mubr.bf16.mxu0 %v1901
        %2372 = vmatmul.mubr.bf16.gmra.mrb[0].mxu0 %v1900
        %v2373 = vpop.f32.mrb[0].mxu0
        %v2374 = vadd.f32 %v2333, %v2373
        %v2375 = vpop.f32.mrb[0].mxu0
        %v2376 = vadd.f32 %v2335, %v2375
        %v2377 = vpop.f32.mrb[0].mxu0
        %v2378 = vpop.f32.mrb[0].mxu0
        %2379 = vdwg.mxu0
        %vm2380 = vcmp.gt.f32.partialorder %v2374, 0.0
        %vm2381 = vcmp.gt.f32.partialorder %v2376, 0.0
        %v2382 = vmul.f32 %v2374, 0.2
        %v2383 = vmul.f32 %v2376, 0.2
        %v2384 = vsel %vm2380, %v2374, %v2382
        %v2385 = vsel %vm2381, %v2376, %v2383
        %v2386 = vpack.c.bf16 %v2384, %v2384
        %v2387 = vpack.c.bf16 %v2385, %v2385
        %v2388 = vld [vmem:[#allocation9] sm:$0xf]
        %v2389 = vld [vmem:[#allocation9 + $0x4] sm:$0xf]
        %v2390 = vld [vmem:[#allocation9 + $0x8] sm:$0xf]
        %v2391 = vld [vmem:[#allocation9 + $0xc] sm:$0xf]
        %v2392 = vld [vmem:[#allocation9 + $0x10] sm:$0xf]
        %v2393 = vld [vmem:[#allocation9 + $0x14] sm:$0xf]
        %v2394 = vld [vmem:[#allocation9 + $0x18] sm:$0xf]
        %v2395 = vld [vmem:[#allocation9 + $0x1c] sm:$0xf]
        %v2396 = vld [vmem:[#allocation9 + $0x20] sm:$0xf]
        %v2397 = vld [vmem:[#allocation9 + $0x24] sm:$0xf]
        %v2398 = vld [vmem:[#allocation9 + $0x28] sm:$0xf]
        %v2399 = vld [vmem:[#allocation9 + $0x2c] sm:$0xf]
        %v2400 = vld [vmem:[#allocation9 + $0x30] sm:$0xf]
        %v2401 = vld [vmem:[#allocation9 + $0x34] sm:$0xf]
        %v2402 = vld [vmem:[#allocation9 + $0x38] sm:$0xf]
        %v2403 = vld [vmem:[#allocation9 + $0x3c] sm:$0xf]
        %v2404 = vld [vmem:[#allocation9 + $0x40] sm:$0xf]
        %v2405 = vld [vmem:[#allocation9 + $0x44] sm:$0xf]
        %v2406 = vld [vmem:[#allocation9 + $0x48] sm:$0xf]
        %v2407 = vld [vmem:[#allocation9 + $0x4c] sm:$0xf]
        %v2408 = vld [vmem:[#allocation9 + $0x50] sm:$0xf]
        %v2409 = vld [vmem:[#allocation9 + $0x54] sm:$0xf]
        %v2410 = vld [vmem:[#allocation9 + $0x58] sm:$0xf]
        %v2411 = vld [vmem:[#allocation9 + $0x5c] sm:$0xf]
        %v2412 = vld [vmem:[#allocation9 + $0x60] sm:$0xf]
        %v2413 = vld [vmem:[#allocation9 + $0x64] sm:$0xf]
        %v2414 = vld [vmem:[#allocation9 + $0x68] sm:$0xf]
        %v2415 = vld [vmem:[#allocation9 + $0x6c] sm:$0xf]
        %v2416 = vld [vmem:[#allocation9 + $0x70] sm:$0xf]
        %v2417 = vld [vmem:[#allocation9 + $0x74] sm:$0xf]
        %v2418 = vld [vmem:[#allocation9 + $0x78] sm:$0xf]
        %v2419 = vld [vmem:[#allocation9 + $0x7c] sm:$0xf]
        %v2420 = vld [vmem:[#allocation2] sm:$0x1]
        %v2422 = vlaneseq
        %v2423 = vshrl.u32 %v2422, 7
        %v2424 = vsub.s32 0, %v2423
        %v2425 = vrot.slane %v2420, %v2424
        %2426 = vset.pattern.permute.xlu0 0
        %2427 = vperm.xlu0 %2426, %v2425
        %v2428 = vpop.permute.xlu0 %2427
        %v2462 = vunpack.c.l.b16 %v2388
        %v2463 = vunpack.c.l.b16 %v2389
        %v2464 = vunpack.c.l.b16 %v2390
        %v2465 = vunpack.c.l.b16 %v2391
        %v2466 = vunpack.c.l.b16 %v2392
        %v2467 = vunpack.c.l.b16 %v2393
        %v2468 = vunpack.c.l.b16 %v2394
        %v2469 = vunpack.c.l.b16 %v2395
        %v2470 = vunpack.c.l.b16 %v2396
        %v2471 = vunpack.c.l.b16 %v2397
        %v2472 = vunpack.c.l.b16 %v2398
        %v2473 = vunpack.c.l.b16 %v2399
        %v2474 = vunpack.c.l.b16 %v2400
        %v2475 = vunpack.c.l.b16 %v2401
        %v2476 = vunpack.c.l.b16 %v2402
        %v2477 = vunpack.c.l.b16 %v2403
        %v2478 = vunpack.c.l.b16 %v2404
        %v2479 = vunpack.c.l.b16 %v2405
        %v2480 = vunpack.c.l.b16 %v2406
        %v2481 = vunpack.c.l.b16 %v2407
        %v2482 = vunpack.c.l.b16 %v2408
        %v2483 = vunpack.c.l.b16 %v2409
        %v2484 = vunpack.c.l.b16 %v2410
        %v2485 = vunpack.c.l.b16 %v2411
        %v2486 = vunpack.c.l.b16 %v2412
        %v2487 = vunpack.c.l.b16 %v2413
        %v2488 = vunpack.c.l.b16 %v2414
        %v2489 = vunpack.c.l.b16 %v2415
        %v2490 = vunpack.c.l.b16 %v2416
        %v2491 = vunpack.c.l.b16 %v2417
        %v2492 = vunpack.c.l.b16 %v2418
        %v2493 = vunpack.c.l.b16 %v2419
        %v2494 = vpack.c.b16 %v2463, %v2462
        %v2495 = vpack.c.b16 %v2465, %v2464
        %v2496 = vpack.c.b16 %v2467, %v2466
        %v2497 = vpack.c.b16 %v2469, %v2468
        %v2498 = vpack.c.b16 %v2471, %v2470
        %v2499 = vpack.c.b16 %v2473, %v2472
        %v2500 = vpack.c.b16 %v2475, %v2474
        %v2501 = vpack.c.b16 %v2477, %v2476
        %v2502 = vpack.c.b16 %v2479, %v2478
        %v2503 = vpack.c.b16 %v2481, %v2480
        %v2504 = vpack.c.b16 %v2483, %v2482
        %v2505 = vpack.c.b16 %v2485, %v2484
        %v2506 = vpack.c.b16 %v2487, %v2486
        %v2507 = vpack.c.b16 %v2489, %v2488
        %v2508 = vpack.c.b16 %v2491, %v2490
        %v2509 = vpack.c.b16 %v2493, %v2492
        %2526 = vmatprep.subr.bf16.mxu0 0
        %2527 = vmatpush1.bf16.msra.mxu0 %v2494
        %2528 = vmatprep.subr.bf16.mxu0 0
        %2529 = vmatpush1.bf16.msra.mxu0 %v2495
        %2530 = vmatprep.subr.bf16.mxu0 0
        %2531 = vmatpush1.bf16.msra.mxu0 %v2496
        %2532 = vmatprep.subr.bf16.mxu0 0
        %2533 = vmatpush1.bf16.msra.mxu0 %v2497
        %2534 = vmatprep.subr.bf16.mxu0 0
        %2535 = vmatpush1.bf16.msra.mxu0 %v2498
        %2536 = vmatprep.subr.bf16.mxu0 0
        %2537 = vmatpush1.bf16.msra.mxu0 %v2499
        %2538 = vmatprep.subr.bf16.mxu0 0
        %2539 = vmatpush1.bf16.msra.mxu0 %v2500
        %2540 = vmatprep.subr.bf16.mxu0 0
        %2541 = vmatpush1.bf16.msra.mxu0 %v2501
        %2542 = vmatprep.subr.bf16.mxu0 0
        %2543 = vmatpush1.bf16.msra.mxu0 %v2502
        %2544 = vmatprep.subr.bf16.mxu0 0
        %2545 = vmatpush1.bf16.msra.mxu0 %v2503
        %2546 = vmatprep.subr.bf16.mxu0 0
        %2547 = vmatpush1.bf16.msra.mxu0 %v2504
        %2548 = vmatprep.subr.bf16.mxu0 0
        %2549 = vmatpush1.bf16.msra.mxu0 %v2505
        %2550 = vmatprep.subr.bf16.mxu0 0
        %2551 = vmatpush1.bf16.msra.mxu0 %v2506
        %2552 = vmatprep.subr.bf16.mxu0 0
        %2553 = vmatpush1.bf16.msra.mxu0 %v2507
        %2554 = vmatprep.subr.bf16.mxu0 0
        %2555 = vmatpush1.bf16.msra.mxu0 %v2508
        %2556 = vmatprep.subr.bf16.mxu0 0
        %2557 = vmatpush1.bf16.msra.mxu0 %v2509
        %2558 = vmatprep.mubr.bf16.mxu0 %v2387
        %2559 = vmatmul.mubr.bf16.gmra.mrb[0].mxu0 %v2386
        %v2560 = vpop.f32.mrb[0].mxu0
        %v2561 = vadd.f32 %v2428, %v2560
        %v2562 = vpop.f32.mrb[0].mxu0
        %v2563 = vpop.f32.mrb[0].mxu0
        %v2564 = vpop.f32.mrb[0].mxu0
        %2565 = vdwg.mxu0
        %v2566 = vsub.f32 0.0, %v2561
        %v2567 = vmul.f32 %v2566, 1.442695
        %v2568 = vpow.pop %v2567
        %v2569 = vadd.f32 %v2568, 1.0
        %v2570 = vrcp.pop %v2569
        %v2571 = vmul.f32 1.0, %v2570
        %v2572 = vpack.c.bf16 %v2571, %v2571
        %2573 = vst [vmem:[%s340] sm:$0xf] %v2572
        %s2574 = sand.u32 %s188, 1
        %s2575 = scalar_lea.sflag [#allocation5], %s2574
        %s2576 = sand.u32 %s188, 1
        %s2577 = smul.addr %s2576, 4
        %s2578 = scalar_lea.vmem [#allocation11], %s2577
        // Predicated region
        $region65: #{tpu_custom_call.1} parent=47 // pred_check
          %p2579 = pneg %p198
        $region66: #{tpu_custom_call.1} parent=47 // pred_check_branch
          %2581 = sbr.rel (%p2579) target = $region68
        $region67: #{tpu_custom_call.1} parent=47 // pred_region
          %s2583 = ssub.s32 64, 64
          %2584 = vsyncadd %s2575, %s2583
          %s2585 = smul.addr %s28, 64
          %s2586 = scalar_lea.hbm %s7, %s2585
          %s2588 = sshll.u32 %s2578, 4
          %s2589 = int_to_ptr.vmem [resolvable:$true] %s2588
          %2591 = dma.vmem_to_hbm [thread:$0]  %s2589, 64, %s2586, %s2575
        $region68: #{tpu_custom_call.1} parent=47 // pred_fallthru
          _
      $region48: #{tpu_custom_call.1} parent=5 // pred_fallthru
        _
      %p2592 = scmp.le.s32.totalorder 2, %s23
      // Predicated region
      $region69: #{tpu_custom_call.1} parent=5 // pred_check
        %p2593 = pneg %p2592
      $region70: #{tpu_custom_call.1} parent=5 // pred_check_branch
        %2595 = sbr.rel (%p2593) target = $region72
      $region71: #{tpu_custom_call.1} parent=5 // pred_region
        %s2596 = ssub.s32 %s23, 2
        // Predicated region
        $region73: #{tpu_custom_call.1} parent=71 // pred_check
          %p2597 = pneg %p204
        $region74: #{tpu_custom_call.1} parent=71 // pred_check_branch
          %2599 = sbr.rel (%p2597) target = $region76
        $region75: #{tpu_custom_call.1} parent=71 // pred_region
          %s2600 = sand.u32 %s189, 1
          %s2601 = scalar_lea.sflag [#allocation5], %s2600
          %s2602 = sand.u32 %s189, 1
          %s2603 = smul.addr %s2602, 4
          %s2604 = scalar_lea.vmem [#allocation11], %s2603
          %2605 = dma.done %s2601, 64
        $region76: #{tpu_custom_call.1} parent=71 // pred_fallthru
          _
      $region72: #{tpu_custom_call.1} parent=5 // pred_fallthru
        _
    $region6: #{tpu_custom_call.1} parent=1 // loop_footer
      %s27 = sadd.s32 1, %s23
    $region7: #{tpu_custom_call.1} parent=1 // loop_footer_branch
      %22 = sbr.rel target = $region3
    $region8: #{tpu_custom_call.1} parent=1 // loop_exit
      _
    %2606 = vsyncpa [#allocation4], 1
    %s2607 = scalar_lea.sflag [#allocation4], 1
    %2608 = vsyncpa %s2607, 1
    %2609 = vsyncpa [#allocation7], 1
    %2610 = vsyncpa [#allocation10], 1
    %2611 = vsyncpa [#allocation5], 1
    %s2612 = scalar_lea.sflag [#allocation5], 1
    %2613 = vsyncpa %s2612, 1

</llo_original>
